<compile_context>
chip_gen: v5e
topology: v5e:2x2
jax: 0.10.0
libtpu: 0.0.40
codegen_flags: <defaults>
</compile_context>

<pallas_src>
import jax
import jax.numpy as jnp
from jax.experimental import pallas as pl
from jax.experimental.pallas import tpu as pltpu


def _lstm_cell(gates, c_prev, H):
    """gates: (B, 4H) f32 in PyTorch order i,f,g,o. Returns (h_new, c_new) f32."""
    i_g = jax.nn.sigmoid(gates[:, 0:H])
    f_g = jax.nn.sigmoid(gates[:, H:2 * H])
    g_g = jnp.tanh(gates[:, 2 * H:3 * H])
    o_g = jax.nn.sigmoid(gates[:, 3 * H:4 * H])
    c_new = f_g * c_prev + i_g * g_g
    h_new = o_g * jnp.tanh(c_new)
    return h_new, c_new


def _make_kernel(num_layers, hidden_size, t_blk, batch):
    H = hidden_size
    B = batch
    bf16 = jnp.bfloat16

    def kernel(x_ref, w_ih0_ref, w_hh0_ref, b0_ref, *refs):
        # refs = [w_ih_1, w_hh_1, b_1, ..., w_ih_{L-1}, w_hh_{L-1}, b_{L-1},
        #         fc_w, fc_b, out_ref, h_scr, c_scr, hb_scr]
        n_extra = 3 * (num_layers - 1)
        layer_refs = refs[:n_extra]
        fc_w_ref, fc_b_ref, out_ref, h_scr, c_scr, hb_scr = refs[n_extra:]

        tb = pl.program_id(0)

        @pl.when(tb == 0)
        def _():
            h_scr[...] = jnp.zeros_like(h_scr)   # h0 = zeros
            c_scr[...] = jnp.zeros_like(c_scr)   # c0 = zeros

        # ---- Layer 0: block input projection (one big-M matmul per grid step),
        # then the serial recurrence only carries the small h @ W_hh matmul.
        gi = (jnp.dot(x_ref[...], w_ih0_ref[...],
                      preferred_element_type=jnp.float32)
              + b0_ref[...])                                    # (t_blk*B, 4H) f32
        w_hh = w_hh0_ref[...]                                   # (H, 4H) bf16
        h = h_scr[0]
        c = c_scr[0]
        # Static unroll is fine at t_blk=8; for larger t_blk use
        # lax.fori_loop(..., unroll=2..4) to bound live ranges.
        for tt in range(t_blk):
            gates = (gi[tt * B:(tt + 1) * B, :]
                     + jnp.dot(h.astype(bf16), w_hh,
                               preferred_element_type=jnp.float32))
            h, c = _lstm_cell(gates, c, H)
            if num_layers > 1:
                hb_scr[tt * B:(tt + 1) * B, :] = h              # feed layer above
        h_scr[0] = h
        c_scr[0] = c

        # ---- Layers >= 1 (cuDNN-style): per-block input projection as one
        # MXU-filling matmul, serial loop does only the recurrent matmul.
        for l in range(1, num_layers):
            w_ih = layer_refs[3 * (l - 1)][...]                 # (H, 4H) bf16
            w_hh = layer_refs[3 * (l - 1) + 1][...]             # (H, 4H) bf16
            b_l = layer_refs[3 * (l - 1) + 2][...]              # (1, 4H) f32

            gi = (jnp.dot(hb_scr[...].astype(bf16), w_ih,
                          preferred_element_type=jnp.float32)
                  + b_l)                                        # (t_blk*B, 4H)

            h = h_scr[l]
            c = c_scr[l]
            for tt in range(t_blk):
                gates = (gi[tt * B:(tt + 1) * B, :]
                         + jnp.dot(h.astype(bf16), w_hh,
                                   preferred_element_type=jnp.float32))
                h, c = _lstm_cell(gates, c, H)
                if l < num_layers - 1:
                    hb_scr[tt * B:(tt + 1) * B, :] = h
            h_scr[l] = h
            c_scr[l] = c

        @pl.when(tb == pl.num_programs(0) - 1)
        def _():
            # out = fc(out[:, -1, :]) -- lane-padded FC output; `h` is the top
            # layer's final hidden state of the last block.
            out_ref[...] = (jnp.dot(h.astype(bf16), fc_w_ref[...],
                                    preferred_element_type=jnp.float32)
                            + fc_b_ref[...])

    return kernel


def rnn_forward(x, params, *, num_layers, hidden_size, num_classes, t_blk=8):
    """x: (B, S, input_size) float32, batch_first like PyTorch."""
    B, S, In = x.shape
    H = hidden_size
    assert S % t_blk == 0, "t_blk must divide seq length"
    # Second-minor (sublane) constraint on the time-major x block.
    assert (t_blk * B) % 8 == 0 or t_blk == S, \
        "t_blk * batch must be a multiple of 8 (or t_blk == S)"
    C_pad = params["fc_w"].shape[1]

    # Time-major 2-D x: row (t*B + b) holds x[b, t, :].  bf16 halves the
    # streamed HBM traffic; the layer-0 projection happens in-kernel.
    x2 = jnp.transpose(x, (1, 0, 2)).reshape(S * B, In).astype(jnp.bfloat16)

    kernel = _make_kernel(num_layers, H, t_blk, B)

    def wspec(shape):
        # Constant-index weights: single-buffered residency (halves VMEM use).
        try:
            return pl.BlockSpec(shape, lambda t: (0, 0),
                                pipeline_mode=pl.Buffered(1))
        except (TypeError, AttributeError):
            return pl.BlockSpec(shape, lambda t: (0, 0))

    args = [x2, params["w_ih0"], params["w_hh0"], params["b0"]]
    in_specs = [
        pl.BlockSpec((t_blk * B, In), lambda t: (t, 0)),   # streamed per block
        wspec((In, 4 * H)),                                # W_ih layer 0
        wspec((H, 4 * H)),                                 # W_hh layer 0
        wspec((1, 4 * H)),                                 # bias layer 0
    ]
    for l in range(1, num_layers):
        args += [params["w_ih"][l - 1], params["w_hh"][l - 1], params["b"][l - 1]]
        in_specs += [wspec((H, 4 * H)), wspec((H, 4 * H)), wspec((1, 4 * H))]
    args += [params["fc_w"], params["fc_b"]]
    in_specs += [wspec((H, C_pad)), wspec((1, C_pad))]

    # Generation-aware VMEM budget (v5e/v6e: 128 MiB physical, v7x: 64 MiB).
    try:
        vmem_cap = pltpu.get_tpu_info().vmem_capacity_bytes
    except Exception:
        vmem_cap = 128 * 1024 * 1024
    vmem_limit = int(min(100 * 1024 * 1024, (vmem_cap * 3) // 4))

    out_padded = pl.pallas_call(
        kernel,
        out_shape=jax.ShapeDtypeStruct((B, C_pad), jnp.float32),
        grid_spec=pltpu.PrefetchScalarGridSpec(
            num_scalar_prefetch=0,
            grid=(S // t_blk,),
            in_specs=in_specs,
            out_specs=pl.BlockSpec((B, C_pad), lambda t: (0, 0)),
            scratch_shapes=[
                pltpu.VMEM((num_layers, B, H), jnp.float32),   # h carry
                pltpu.VMEM((num_layers, B, H), jnp.float32),   # c carry
                pltpu.VMEM((t_blk * B, H), jnp.float32),       # layer-below h block
            ],
        ),
        compiler_params=pltpu.CompilerParams(
            dimension_semantics=("arbitrary",),        # serial carry over time
            vmem_limit_bytes=vmem_limit,
        ),
    )(*args)
    return out_padded[:, :num_classes]


def init_params(key, input_size, hidden_size, num_layers, num_classes):
    """PyTorch-shaped init (uniform +-1/sqrt(H)). Returns (kernel_params, f32_ref_params)."""
    H = hidden_size
    bound = 1.0 / (H ** 0.5)
    C_pad = 128 * ((num_classes + 127) // 128)

    f32_layers = []
    for l in range(num_layers):
        in_l = input_size if l == 0 else H
        key, k1, k2, k3, k4 = jax.random.split(key, 5)
        w_ih = jax.random.uniform(k1, (in_l, 4 * H), jnp.float32, -bound, bound)
        w_hh = jax.random.uniform(k2, (H, 4 * H), jnp.float32, -bound, bound)
        b_ih = jax.random.uniform(k3, (4 * H,), jnp.float32, -bound, bound)
        b_hh = jax.random.uniform(k4, (4 * H,), jnp.float32, -bound, bound)
        f32_layers.append((w_ih, w_hh, (b_ih + b_hh)[None, :]))
    key, k5, k6 = jax.random.split(key, 3)
    fc_w = jax.random.uniform(k5, (H, num_classes), jnp.float32, -bound, bound)
    fc_b = jax.random.uniform(k6, (num_classes,), jnp.float32, -bound, bound)[None, :]

    ref_params = {"layers": f32_layers, "fc_w": fc_w, "fc_b": fc_b}

    kparams = {
        "w_ih0": f32_layers[0][0].astype(jnp.bfloat16),
        "w_hh0": f32_layers[0][1].astype(jnp.bfloat16),
        "b0": f32_layers[0][2],
        "w_ih": [f32_layers[l][0].astype(jnp.bfloat16) for l in range(1, num_layers)],
        "w_hh": [f32_layers[l][1].astype(jnp.bfloat16) for l in range(1, num_layers)],
        "b": [f32_layers[l][2] for l in range(1, num_layers)],
        "fc_w": jnp.pad(fc_w, ((0, 0), (0, C_pad - num_classes))).astype(jnp.bfloat16),
        "fc_b": jnp.pad(fc_b, ((0, 0), (0, C_pad - num_classes))),
    }
    return kparams, ref_params


def rnn_reference_f32(x, ref_params, *, num_layers, hidden_size):
    """Pure-f32 JAX reference (PyTorch semantics)."""
    B, S, In = x.shape
    H = hidden_size
    h = [jnp.zeros((B, H), jnp.float32) for _ in range(num_layers)]
    c = [jnp.zeros((B, H), jnp.float32) for _ in range(num_layers)]
    for t in range(S):
        inp = x[:, t, :]
        for l in range(num_layers):
            w_ih, w_hh, b = ref_params["layers"][l]
            gates = inp @ w_ih + h[l] @ w_hh + b
            h[l], c[l] = _lstm_cell(gates, c[l], H)
            inp = h[l]
    return inp @ ref_params["fc_w"] + ref_params["fc_b"]


def rnn_reference_bf16(x, kparams, *, num_layers, hidden_size, num_classes):
    """Reference matching the kernel's arithmetic (bf16 operands, f32 accumulate)."""
    B, S, In = x.shape
    H = hidden_size
    bf16 = jnp.bfloat16
    xb = x.astype(bf16)
    h = [jnp.zeros((B, H), jnp.float32) for _ in range(num_layers)]
    c = [jnp.zeros((B, H), jnp.float32) for _ in range(num_layers)]
    for t in range(S):
        gi0 = (jnp.dot(xb[:, t, :], kparams["w_ih0"],
                       preferred_element_type=jnp.float32) + kparams["b0"])
        gates0 = gi0 + jnp.dot(h[0].astype(bf16), kparams["w_hh0"],
                               preferred_element_type=jnp.float32)
        h[0], c[0] = _lstm_cell(gates0, c[0], H)
        inp = h[0]
        for l in range(1, num_layers):
            gi = (jnp.dot(inp.astype(bf16), kparams["w_ih"][l - 1],
                          preferred_element_type=jnp.float32)
                  + kparams["b"][l - 1])
            gates = gi + jnp.dot(h[l].astype(bf16), kparams["w_hh"][l - 1],
                                 preferred_element_type=jnp.float32)
            h[l], c[l] = _lstm_cell(gates, c[l], H)
            inp = h[l]
    out = (jnp.dot(h[num_layers - 1].astype(bf16), kparams["fc_w"],
                   preferred_element_type=jnp.float32) + kparams["fc_b"])
    return out[:, :num_classes]


if __name__ == "__main__":
    # Small shapes consistent with the module; seq chosen so the kernel runs
    # multiple time blocks (grid=(2,)) and exercises the state carry.
    batch, seq, input_size = 2, 16, 16
    hidden_size, num_layers, num_classes = 32, 2, 10
    t_blk = 8

    key = jax.random.PRNGKey(0)
    key, kx = jax.random.split(key)
    x = jax.random.normal(kx, (batch, seq, input_size), jnp.float32)
    kparams, ref_params = init_params(key, input_size, hidden_size,
                                      num_layers, num_classes)

    out = rnn_forward(x, kparams, num_layers=num_layers,
                      hidden_size=hidden_size, num_classes=num_classes,
                      t_blk=t_blk)
    out = jax.block_until_ready(out)
    assert out.shape == (batch, num_classes)

    # Tight check vs a reference that uses identical (bf16/f32) arithmetic.
    ref_b = rnn_reference_bf16(x, kparams, num_layers=num_layers,
                               hidden_size=hidden_size, num_classes=num_classes)
    assert jnp.allclose(out, ref_b, atol=2e-3, rtol=2e-3), \
        f"bf16-ref mismatch: {jnp.max(jnp.abs(out - ref_b))}"

    # Looser semantic check vs the pure-f32 (PyTorch-equivalent) reference.
    ref_f = rnn_reference_f32(x, ref_params, num_layers=num_layers,
                              hidden_size=hidden_size)
    assert jnp.allclose(out, ref_f, atol=6e-2, rtol=6e-2), \
        f"f32-ref mismatch: {jnp.max(jnp.abs(out - ref_f))}"

    print("KERNEL_OK")
</pallas_src>

<mosaic_0001>
module attributes {stable_mosaic.version = 11 : i64} {
  func.func @kernel(%arg0: i32, %arg1: memref<16x16xbf16, #tpu.memory_space<vmem>>, %arg2: memref<16x128xbf16, #tpu.memory_space<vmem>>, %arg3: memref<32x128xbf16, #tpu.memory_space<vmem>>, %arg4: memref<1x128xf32, #tpu.memory_space<vmem>>, %arg5: memref<32x128xbf16, #tpu.memory_space<vmem>>, %arg6: memref<32x128xbf16, #tpu.memory_space<vmem>>, %arg7: memref<1x128xf32, #tpu.memory_space<vmem>>, %arg8: memref<32x128xbf16, #tpu.memory_space<vmem>>, %arg9: memref<1x128xf32, #tpu.memory_space<vmem>>, %arg10: memref<2x128xf32, #tpu.memory_space<vmem>>, %arg11: memref<2x2x32xf32, #tpu.memory_space<vmem>>, %arg12: memref<2x2x32xf32, #tpu.memory_space<vmem>>, %arg13: memref<16x32xf32, #tpu.memory_space<vmem>>) attributes {dimension_semantics = [#tpu.dimension_semantics<arbitrary>], iteration_bounds = array<i64: 2>, scalar_prefetch = 0 : i64, scratch_operands = 3 : i64, tpu.core_type = #tpu.core_type<tc>, window_params = [{transform_indices = @transform_0, window_bounds = array<i64: 16, 16>}, {pipeline_mode = #tpu.pipeline_mode<synchronous>, transform_indices = @transform_1, window_bounds = array<i64: 16, 128>}, {pipeline_mode = #tpu.pipeline_mode<synchronous>, transform_indices = @transform_2, window_bounds = array<i64: 32, 128>}, {pipeline_mode = #tpu.pipeline_mode<synchronous>, transform_indices = @transform_3, window_bounds = array<i64: 1, 128>}, {pipeline_mode = #tpu.pipeline_mode<synchronous>, transform_indices = @transform_4, window_bounds = array<i64: 32, 128>}, {pipeline_mode = #tpu.pipeline_mode<synchronous>, transform_indices = @transform_5, window_bounds = array<i64: 32, 128>}, {pipeline_mode = #tpu.pipeline_mode<synchronous>, transform_indices = @transform_6, window_bounds = array<i64: 1, 128>}, {pipeline_mode = #tpu.pipeline_mode<synchronous>, transform_indices = @transform_7, window_bounds = array<i64: 32, 128>}, {pipeline_mode = #tpu.pipeline_mode<synchronous>, transform_indices = @transform_8, window_bounds = array<i64: 1, 128>}, {pipeline_mode = #tpu.pipeline_mode<synchronous>, transform_indices = @transform_9, window_bounds = array<i64: 2, 128>}]} {
    %c0_i32 = arith.constant 0 : i32
    %0 = arith.cmpi eq, %arg0, %c0_i32 : i32
    %1 = arith.extui %0 : i1 to i32
    %c0_i32_0 = arith.constant 0 : i32
    %2 = arith.cmpi ne, %1, %c0_i32_0 : i32
    scf.if %2 {
      %cst_114 = arith.constant 0.000000e+00 : f32
      %513 = vector.broadcast %cst_114 : f32 to vector<2x2x32xf32>
      %c0_115 = arith.constant 0 : index
      %c0_116 = arith.constant 0 : index
      %c0_117 = arith.constant 0 : index
      %514 = vector.load %arg11[%c0_115, %c0_116, %c0_117] : memref<2x2x32xf32, #tpu.memory_space<vmem>>, vector<2x2x32xf32>
      tpu.vector_store %arg11[%c0_115, %c0_116, %c0_117], %513 {strides = array<i32>} : memref<2x2x32xf32, #tpu.memory_space<vmem>>, vector<2x2x32xf32>,
      %cst_118 = arith.constant 0.000000e+00 : f32
      %515 = vector.broadcast %cst_118 : f32 to vector<2x2x32xf32>
      %c0_119 = arith.constant 0 : index
      %c0_120 = arith.constant 0 : index
      %c0_121 = arith.constant 0 : index
      %516 = vector.load %arg12[%c0_119, %c0_120, %c0_121] : memref<2x2x32xf32, #tpu.memory_space<vmem>>, vector<2x2x32xf32>
      tpu.vector_store %arg12[%c0_119, %c0_120, %c0_121], %515 {strides = array<i32>} : memref<2x2x32xf32, #tpu.memory_space<vmem>>, vector<2x2x32xf32>,
    } else {
    }
    %c0 = arith.constant 0 : index
    %c0_1 = arith.constant 0 : index
    %3 = vector.load %arg1[%c0, %c0_1] : memref<16x16xbf16, #tpu.memory_space<vmem>>, vector<16x16xbf16>
    %c0_2 = arith.constant 0 : index
    %c0_3 = arith.constant 0 : index
    %4 = vector.load %arg2[%c0_2, %c0_3] : memref<16x128xbf16, #tpu.memory_space<vmem>>, vector<16x128xbf16>
    %cst = arith.constant dense<0.000000e+00> : vector<16x128xf32>
    %5 = tpu.matmul %3, %4, %cst {dimension_numbers = #tpu.dot_dimension_numbers<[1], [0], [0], [1], [0, 0, 1, 1], [], []>} : vector<16x16xbf16>, vector<16x128xbf16>, vector<16x128xf32> -> vector<16x128xf32>
    %c0_4 = arith.constant 0 : index
    %c0_5 = arith.constant 0 : index
    %6 = vector.load %arg4[%c0_4, %c0_5] : memref<1x128xf32, #tpu.memory_space<vmem>>, vector<1x128xf32>
    %7 = vector.broadcast %6 : vector<1x128xf32> to vector<16x128xf32>
    %8 = arith.addf %5, %7 : vector<16x128xf32>
    %c0_6 = arith.constant 0 : index
    %c0_7 = arith.constant 0 : index
    %9 = vector.load %arg3[%c0_6, %c0_7] : memref<32x128xbf16, #tpu.memory_space<vmem>>, vector<32x128xbf16>
    %c0_8 = arith.constant 0 : index
    %c0_9 = arith.constant 0 : index
    %c0_10 = arith.constant 0 : index
    %10 = vector.load %arg11[%c0_8, %c0_9, %c0_10] : memref<2x2x32xf32, #tpu.memory_space<vmem>>, vector<1x2x32xf32>
    %11 = vector.shape_cast %10 : vector<1x2x32xf32> to vector<2x32xf32>
    %c0_11 = arith.constant 0 : index
    %c0_12 = arith.constant 0 : index
    %c0_13 = arith.constant 0 : index
    %12 = vector.load %arg12[%c0_11, %c0_12, %c0_13] : memref<2x2x32xf32, #tpu.memory_space<vmem>>, vector<1x2x32xf32>
    %13 = vector.shape_cast %12 : vector<1x2x32xf32> to vector<2x32xf32>
    %14 = vector.extract_strided_slice %8 {offsets = [0, 0], sizes = [2, 128], strides = [1, 1]} : vector<16x128xf32> to vector<2x128xf32>
    %15 = arith.truncf %11 : vector<2x32xf32> to vector<2x32xbf16>
    %cst_14 = arith.constant dense<0.000000e+00> : vector<2x128xf32>
    %16 = tpu.matmul %15, %9, %cst_14 {dimension_numbers = #tpu.dot_dimension_numbers<[1], [0], [0], [1], [0, 0, 1, 1], [], []>} : vector<2x32xbf16>, vector<32x128xbf16>, vector<2x128xf32> -> vector<2x128xf32>
    %17 = arith.addf %14, %16 : vector<2x128xf32>
    %18 = vector.extract_strided_slice %17 {offsets = [0, 0], sizes = [2, 32], strides = [1, 1]} : vector<2x128xf32> to vector<2x32xf32>
    %19 = arith.negf %18 : vector<2x32xf32>
    %20 = math.exp %19 : vector<2x32xf32>
    %cst_15 = arith.constant 1.000000e+00 : f32
    %21 = vector.broadcast %cst_15 : f32 to vector<2x32xf32>
    %22 = arith.addf %21, %20 : vector<2x32xf32>
    %23 = arith.divf %21, %22 : vector<2x32xf32>
    %24 = vector.extract_strided_slice %17 {offsets = [0, 32], sizes = [2, 32], strides = [1, 1]} : vector<2x128xf32> to vector<2x32xf32>
    %25 = arith.negf %24 : vector<2x32xf32>
    %26 = math.exp %25 : vector<2x32xf32>
    %cst_16 = arith.constant 1.000000e+00 : f32
    %27 = vector.broadcast %cst_16 : f32 to vector<2x32xf32>
    %28 = arith.addf %27, %26 : vector<2x32xf32>
    %29 = arith.divf %27, %28 : vector<2x32xf32>
    %30 = vector.extract_strided_slice %17 {offsets = [0, 64], sizes = [2, 32], strides = [1, 1]} : vector<2x128xf32> to vector<2x32xf32>
    %31 = math.tanh %30 : vector<2x32xf32>
    %32 = vector.extract_strided_slice %17 {offsets = [0, 96], sizes = [2, 32], strides = [1, 1]} : vector<2x128xf32> to vector<2x32xf32>
    %33 = arith.negf %32 : vector<2x32xf32>
    %34 = math.exp %33 : vector<2x32xf32>
    %cst_17 = arith.constant 1.000000e+00 : f32
    %35 = vector.broadcast %cst_17 : f32 to vector<2x32xf32>
    %36 = arith.addf %35, %34 : vector<2x32xf32>
    %37 = arith.divf %35, %36 : vector<2x32xf32>
    %38 = arith.mulf %29, %13 : vector<2x32xf32>
    %39 = arith.mulf %23, %31 : vector<2x32xf32>
    %40 = arith.addf %38, %39 : vector<2x32xf32>
    %41 = math.tanh %40 : vector<2x32xf32>
    %42 = arith.mulf %37, %41 : vector<2x32xf32>
    %c0_18 = arith.constant 0 : index
    %c0_19 = arith.constant 0 : index
    %43 = vector.load %arg13[%c0_18, %c0_19] : memref<16x32xf32, #tpu.memory_space<vmem>>, vector<2x32xf32>
    tpu.vector_store %arg13[%c0_18, %c0_19], %42 {strides = array<i32>} : memref<16x32xf32, #tpu.memory_space<vmem>>, vector<2x32xf32>,
    %44 = vector.extract_strided_slice %8 {offsets = [2, 0], sizes = [2, 128], strides = [1, 1]} : vector<16x128xf32> to vector<2x128xf32>
    %45 = arith.truncf %42 : vector<2x32xf32> to vector<2x32xbf16>
    %cst_20 = arith.constant dense<0.000000e+00> : vector<2x128xf32>
    %46 = tpu.matmul %45, %9, %cst_20 {dimension_numbers = #tpu.dot_dimension_numbers<[1], [0], [0], [1], [0, 0, 1, 1], [], []>} : vector<2x32xbf16>, vector<32x128xbf16>, vector<2x128xf32> -> vector<2x128xf32>
    %47 = arith.addf %44, %46 : vector<2x128xf32>
    %48 = vector.extract_strided_slice %47 {offsets = [0, 0], sizes = [2, 32], strides = [1, 1]} : vector<2x128xf32> to vector<2x32xf32>
    %49 = arith.negf %48 : vector<2x32xf32>
    %50 = math.exp %49 : vector<2x32xf32>
    %cst_21 = arith.constant 1.000000e+00 : f32
    %51 = vector.broadcast %cst_21 : f32 to vector<2x32xf32>
    %52 = arith.addf %51, %50 : vector<2x32xf32>
    %53 = arith.divf %51, %52 : vector<2x32xf32>
    %54 = vector.extract_strided_slice %47 {offsets = [0, 32], sizes = [2, 32], strides = [1, 1]} : vector<2x128xf32> to vector<2x32xf32>
    %55 = arith.negf %54 : vector<2x32xf32>
    %56 = math.exp %55 : vector<2x32xf32>
    %cst_22 = arith.constant 1.000000e+00 : f32
    %57 = vector.broadcast %cst_22 : f32 to vector<2x32xf32>
    %58 = arith.addf %57, %56 : vector<2x32xf32>
    %59 = arith.divf %57, %58 : vector<2x32xf32>
    %60 = vector.extract_strided_slice %47 {offsets = [0, 64], sizes = [2, 32], strides = [1, 1]} : vector<2x128xf32> to vector<2x32xf32>
    %61 = math.tanh %60 : vector<2x32xf32>
    %62 = vector.extract_strided_slice %47 {offsets = [0, 96], sizes = [2, 32], strides = [1, 1]} : vector<2x128xf32> to vector<2x32xf32>
    %63 = arith.negf %62 : vector<2x32xf32>
    %64 = math.exp %63 : vector<2x32xf32>
    %cst_23 = arith.constant 1.000000e+00 : f32
    %65 = vector.broadcast %cst_23 : f32 to vector<2x32xf32>
    %66 = arith.addf %65, %64 : vector<2x32xf32>
    %67 = arith.divf %65, %66 : vector<2x32xf32>
    %68 = arith.mulf %59, %40 : vector<2x32xf32>
    %69 = arith.mulf %53, %61 : vector<2x32xf32>
    %70 = arith.addf %68, %69 : vector<2x32xf32>
    %71 = math.tanh %70 : vector<2x32xf32>
    %72 = arith.mulf %67, %71 : vector<2x32xf32>
    %c2 = arith.constant 2 : index
    %c0_24 = arith.constant 0 : index
    %73 = vector.load %arg13[%c2, %c0_24] : memref<16x32xf32, #tpu.memory_space<vmem>>, vector<2x32xf32>
    tpu.vector_store %arg13[%c2, %c0_24], %72 {strides = array<i32>} : memref<16x32xf32, #tpu.memory_space<vmem>>, vector<2x32xf32>,
    %74 = vector.extract_strided_slice %8 {offsets = [4, 0], sizes = [2, 128], strides = [1, 1]} : vector<16x128xf32> to vector<2x128xf32>
    %75 = arith.truncf %72 : vector<2x32xf32> to vector<2x32xbf16>
    %cst_25 = arith.constant dense<0.000000e+00> : vector<2x128xf32>
    %76 = tpu.matmul %75, %9, %cst_25 {dimension_numbers = #tpu.dot_dimension_numbers<[1], [0], [0], [1], [0, 0, 1, 1], [], []>} : vector<2x32xbf16>, vector<32x128xbf16>, vector<2x128xf32> -> vector<2x128xf32>
    %77 = arith.addf %74, %76 : vector<2x128xf32>
    %78 = vector.extract_strided_slice %77 {offsets = [0, 0], sizes = [2, 32], strides = [1, 1]} : vector<2x128xf32> to vector<2x32xf32>
    %79 = arith.negf %78 : vector<2x32xf32>
    %80 = math.exp %79 : vector<2x32xf32>
    %cst_26 = arith.constant 1.000000e+00 : f32
    %81 = vector.broadcast %cst_26 : f32 to vector<2x32xf32>
    %82 = arith.addf %81, %80 : vector<2x32xf32>
    %83 = arith.divf %81, %82 : vector<2x32xf32>
    %84 = vector.extract_strided_slice %77 {offsets = [0, 32], sizes = [2, 32], strides = [1, 1]} : vector<2x128xf32> to vector<2x32xf32>
    %85 = arith.negf %84 : vector<2x32xf32>
    %86 = math.exp %85 : vector<2x32xf32>
    %cst_27 = arith.constant 1.000000e+00 : f32
    %87 = vector.broadcast %cst_27 : f32 to vector<2x32xf32>
    %88 = arith.addf %87, %86 : vector<2x32xf32>
    %89 = arith.divf %87, %88 : vector<2x32xf32>
    %90 = vector.extract_strided_slice %77 {offsets = [0, 64], sizes = [2, 32], strides = [1, 1]} : vector<2x128xf32> to vector<2x32xf32>
    %91 = math.tanh %90 : vector<2x32xf32>
    %92 = vector.extract_strided_slice %77 {offsets = [0, 96], sizes = [2, 32], strides = [1, 1]} : vector<2x128xf32> to vector<2x32xf32>
    %93 = arith.negf %92 : vector<2x32xf32>
    %94 = math.exp %93 : vector<2x32xf32>
    %cst_28 = arith.constant 1.000000e+00 : f32
    %95 = vector.broadcast %cst_28 : f32 to vector<2x32xf32>
    %96 = arith.addf %95, %94 : vector<2x32xf32>
    %97 = arith.divf %95, %96 : vector<2x32xf32>
    %98 = arith.mulf %89, %70 : vector<2x32xf32>
    %99 = arith.mulf %83, %91 : vector<2x32xf32>
    %100 = arith.addf %98, %99 : vector<2x32xf32>
    %101 = math.tanh %100 : vector<2x32xf32>
    %102 = arith.mulf %97, %101 : vector<2x32xf32>
    %c4 = arith.constant 4 : index
    %c0_29 = arith.constant 0 : index
    %103 = vector.load %arg13[%c4, %c0_29] : memref<16x32xf32, #tpu.memory_space<vmem>>, vector<2x32xf32>
    tpu.vector_store %arg13[%c4, %c0_29], %102 {strides = array<i32>} : memref<16x32xf32, #tpu.memory_space<vmem>>, vector<2x32xf32>,
    %104 = vector.extract_strided_slice %8 {offsets = [6, 0], sizes = [2, 128], strides = [1, 1]} : vector<16x128xf32> to vector<2x128xf32>
    %105 = arith.truncf %102 : vector<2x32xf32> to vector<2x32xbf16>
    %cst_30 = arith.constant dense<0.000000e+00> : vector<2x128xf32>
    %106 = tpu.matmul %105, %9, %cst_30 {dimension_numbers = #tpu.dot_dimension_numbers<[1], [0], [0], [1], [0, 0, 1, 1], [], []>} : vector<2x32xbf16>, vector<32x128xbf16>, vector<2x128xf32> -> vector<2x128xf32>
    %107 = arith.addf %104, %106 : vector<2x128xf32>
    %108 = vector.extract_strided_slice %107 {offsets = [0, 0], sizes = [2, 32], strides = [1, 1]} : vector<2x128xf32> to vector<2x32xf32>
    %109 = arith.negf %108 : vector<2x32xf32>
    %110 = math.exp %109 : vector<2x32xf32>
    %cst_31 = arith.constant 1.000000e+00 : f32
    %111 = vector.broadcast %cst_31 : f32 to vector<2x32xf32>
    %112 = arith.addf %111, %110 : vector<2x32xf32>
    %113 = arith.divf %111, %112 : vector<2x32xf32>
    %114 = vector.extract_strided_slice %107 {offsets = [0, 32], sizes = [2, 32], strides = [1, 1]} : vector<2x128xf32> to vector<2x32xf32>
    %115 = arith.negf %114 : vector<2x32xf32>
    %116 = math.exp %115 : vector<2x32xf32>
    %cst_32 = arith.constant 1.000000e+00 : f32
    %117 = vector.broadcast %cst_32 : f32 to vector<2x32xf32>
    %118 = arith.addf %117, %116 : vector<2x32xf32>
    %119 = arith.divf %117, %118 : vector<2x32xf32>
    %120 = vector.extract_strided_slice %107 {offsets = [0, 64], sizes = [2, 32], strides = [1, 1]} : vector<2x128xf32> to vector<2x32xf32>
    %121 = math.tanh %120 : vector<2x32xf32>
    %122 = vector.extract_strided_slice %107 {offsets = [0, 96], sizes = [2, 32], strides = [1, 1]} : vector<2x128xf32> to vector<2x32xf32>
    %123 = arith.negf %122 : vector<2x32xf32>
    %124 = math.exp %123 : vector<2x32xf32>
    %cst_33 = arith.constant 1.000000e+00 : f32
    %125 = vector.broadcast %cst_33 : f32 to vector<2x32xf32>
    %126 = arith.addf %125, %124 : vector<2x32xf32>
    %127 = arith.divf %125, %126 : vector<2x32xf32>
    %128 = arith.mulf %119, %100 : vector<2x32xf32>
    %129 = arith.mulf %113, %121 : vector<2x32xf32>
    %130 = arith.addf %128, %129 : vector<2x32xf32>
    %131 = math.tanh %130 : vector<2x32xf32>
    %132 = arith.mulf %127, %131 : vector<2x32xf32>
    %c6 = arith.constant 6 : index
    %c0_34 = arith.constant 0 : index
    %133 = vector.load %arg13[%c6, %c0_34] : memref<16x32xf32, #tpu.memory_space<vmem>>, vector<2x32xf32>
    tpu.vector_store %arg13[%c6, %c0_34], %132 {strides = array<i32>} : memref<16x32xf32, #tpu.memory_space<vmem>>, vector<2x32xf32>,
    %134 = vector.extract_strided_slice %8 {offsets = [8, 0], sizes = [2, 128], strides = [1, 1]} : vector<16x128xf32> to vector<2x128xf32>
    %135 = arith.truncf %132 : vector<2x32xf32> to vector<2x32xbf16>
    %cst_35 = arith.constant dense<0.000000e+00> : vector<2x128xf32>
    %136 = tpu.matmul %135, %9, %cst_35 {dimension_numbers = #tpu.dot_dimension_numbers<[1], [0], [0], [1], [0, 0, 1, 1], [], []>} : vector<2x32xbf16>, vector<32x128xbf16>, vector<2x128xf32> -> vector<2x128xf32>
    %137 = arith.addf %134, %136 : vector<2x128xf32>
    %138 = vector.extract_strided_slice %137 {offsets = [0, 0], sizes = [2, 32], strides = [1, 1]} : vector<2x128xf32> to vector<2x32xf32>
    %139 = arith.negf %138 : vector<2x32xf32>
    %140 = math.exp %139 : vector<2x32xf32>
    %cst_36 = arith.constant 1.000000e+00 : f32
    %141 = vector.broadcast %cst_36 : f32 to vector<2x32xf32>
    %142 = arith.addf %141, %140 : vector<2x32xf32>
    %143 = arith.divf %141, %142 : vector<2x32xf32>
    %144 = vector.extract_strided_slice %137 {offsets = [0, 32], sizes = [2, 32], strides = [1, 1]} : vector<2x128xf32> to vector<2x32xf32>
    %145 = arith.negf %144 : vector<2x32xf32>
    %146 = math.exp %145 : vector<2x32xf32>
    %cst_37 = arith.constant 1.000000e+00 : f32
    %147 = vector.broadcast %cst_37 : f32 to vector<2x32xf32>
    %148 = arith.addf %147, %146 : vector<2x32xf32>
    %149 = arith.divf %147, %148 : vector<2x32xf32>
    %150 = vector.extract_strided_slice %137 {offsets = [0, 64], sizes = [2, 32], strides = [1, 1]} : vector<2x128xf32> to vector<2x32xf32>
    %151 = math.tanh %150 : vector<2x32xf32>
    %152 = vector.extract_strided_slice %137 {offsets = [0, 96], sizes = [2, 32], strides = [1, 1]} : vector<2x128xf32> to vector<2x32xf32>
    %153 = arith.negf %152 : vector<2x32xf32>
    %154 = math.exp %153 : vector<2x32xf32>
    %cst_38 = arith.constant 1.000000e+00 : f32
    %155 = vector.broadcast %cst_38 : f32 to vector<2x32xf32>
    %156 = arith.addf %155, %154 : vector<2x32xf32>
    %157 = arith.divf %155, %156 : vector<2x32xf32>
    %158 = arith.mulf %149, %130 : vector<2x32xf32>
    %159 = arith.mulf %143, %151 : vector<2x32xf32>
    %160 = arith.addf %158, %159 : vector<2x32xf32>
    %161 = math.tanh %160 : vector<2x32xf32>
    %162 = arith.mulf %157, %161 : vector<2x32xf32>
    %c8 = arith.constant 8 : index
    %c0_39 = arith.constant 0 : index
    %163 = vector.load %arg13[%c8, %c0_39] : memref<16x32xf32, #tpu.memory_space<vmem>>, vector<2x32xf32>
    tpu.vector_store %arg13[%c8, %c0_39], %162 {strides = array<i32>} : memref<16x32xf32, #tpu.memory_space<vmem>>, vector<2x32xf32>,
    %164 = vector.extract_strided_slice %8 {offsets = [10, 0], sizes = [2, 128], strides = [1, 1]} : vector<16x128xf32> to vector<2x128xf32>
    %165 = arith.truncf %162 : vector<2x32xf32> to vector<2x32xbf16>
    %cst_40 = arith.constant dense<0.000000e+00> : vector<2x128xf32>
    %166 = tpu.matmul %165, %9, %cst_40 {dimension_numbers = #tpu.dot_dimension_numbers<[1], [0], [0], [1], [0, 0, 1, 1], [], []>} : vector<2x32xbf16>, vector<32x128xbf16>, vector<2x128xf32> -> vector<2x128xf32>
    %167 = arith.addf %164, %166 : vector<2x128xf32>
    %168 = vector.extract_strided_slice %167 {offsets = [0, 0], sizes = [2, 32], strides = [1, 1]} : vector<2x128xf32> to vector<2x32xf32>
    %169 = arith.negf %168 : vector<2x32xf32>
    %170 = math.exp %169 : vector<2x32xf32>
    %cst_41 = arith.constant 1.000000e+00 : f32
    %171 = vector.broadcast %cst_41 : f32 to vector<2x32xf32>
    %172 = arith.addf %171, %170 : vector<2x32xf32>
    %173 = arith.divf %171, %172 : vector<2x32xf32>
    %174 = vector.extract_strided_slice %167 {offsets = [0, 32], sizes = [2, 32], strides = [1, 1]} : vector<2x128xf32> to vector<2x32xf32>
    %175 = arith.negf %174 : vector<2x32xf32>
    %176 = math.exp %175 : vector<2x32xf32>
    %cst_42 = arith.constant 1.000000e+00 : f32
    %177 = vector.broadcast %cst_42 : f32 to vector<2x32xf32>
    %178 = arith.addf %177, %176 : vector<2x32xf32>
    %179 = arith.divf %177, %178 : vector<2x32xf32>
    %180 = vector.extract_strided_slice %167 {offsets = [0, 64], sizes = [2, 32], strides = [1, 1]} : vector<2x128xf32> to vector<2x32xf32>
    %181 = math.tanh %180 : vector<2x32xf32>
    %182 = vector.extract_strided_slice %167 {offsets = [0, 96], sizes = [2, 32], strides = [1, 1]} : vector<2x128xf32> to vector<2x32xf32>
    %183 = arith.negf %182 : vector<2x32xf32>
    %184 = math.exp %183 : vector<2x32xf32>
    %cst_43 = arith.constant 1.000000e+00 : f32
    %185 = vector.broadcast %cst_43 : f32 to vector<2x32xf32>
    %186 = arith.addf %185, %184 : vector<2x32xf32>
    %187 = arith.divf %185, %186 : vector<2x32xf32>
    %188 = arith.mulf %179, %160 : vector<2x32xf32>
    %189 = arith.mulf %173, %181 : vector<2x32xf32>
    %190 = arith.addf %188, %189 : vector<2x32xf32>
    %191 = math.tanh %190 : vector<2x32xf32>
    %192 = arith.mulf %187, %191 : vector<2x32xf32>
    %c10 = arith.constant 10 : index
    %c0_44 = arith.constant 0 : index
    %193 = vector.load %arg13[%c10, %c0_44] : memref<16x32xf32, #tpu.memory_space<vmem>>, vector<2x32xf32>
    tpu.vector_store %arg13[%c10, %c0_44], %192 {strides = array<i32>} : memref<16x32xf32, #tpu.memory_space<vmem>>, vector<2x32xf32>,
    %194 = vector.extract_strided_slice %8 {offsets = [12, 0], sizes = [2, 128], strides = [1, 1]} : vector<16x128xf32> to vector<2x128xf32>
    %195 = arith.truncf %192 : vector<2x32xf32> to vector<2x32xbf16>
    %cst_45 = arith.constant dense<0.000000e+00> : vector<2x128xf32>
    %196 = tpu.matmul %195, %9, %cst_45 {dimension_numbers = #tpu.dot_dimension_numbers<[1], [0], [0], [1], [0, 0, 1, 1], [], []>} : vector<2x32xbf16>, vector<32x128xbf16>, vector<2x128xf32> -> vector<2x128xf32>
    %197 = arith.addf %194, %196 : vector<2x128xf32>
    %198 = vector.extract_strided_slice %197 {offsets = [0, 0], sizes = [2, 32], strides = [1, 1]} : vector<2x128xf32> to vector<2x32xf32>
    %199 = arith.negf %198 : vector<2x32xf32>
    %200 = math.exp %199 : vector<2x32xf32>
    %cst_46 = arith.constant 1.000000e+00 : f32
    %201 = vector.broadcast %cst_46 : f32 to vector<2x32xf32>
    %202 = arith.addf %201, %200 : vector<2x32xf32>
    %203 = arith.divf %201, %202 : vector<2x32xf32>
    %204 = vector.extract_strided_slice %197 {offsets = [0, 32], sizes = [2, 32], strides = [1, 1]} : vector<2x128xf32> to vector<2x32xf32>
    %205 = arith.negf %204 : vector<2x32xf32>
    %206 = math.exp %205 : vector<2x32xf32>
    %cst_47 = arith.constant 1.000000e+00 : f32
    %207 = vector.broadcast %cst_47 : f32 to vector<2x32xf32>
    %208 = arith.addf %207, %206 : vector<2x32xf32>
    %209 = arith.divf %207, %208 : vector<2x32xf32>
    %210 = vector.extract_strided_slice %197 {offsets = [0, 64], sizes = [2, 32], strides = [1, 1]} : vector<2x128xf32> to vector<2x32xf32>
    %211 = math.tanh %210 : vector<2x32xf32>
    %212 = vector.extract_strided_slice %197 {offsets = [0, 96], sizes = [2, 32], strides = [1, 1]} : vector<2x128xf32> to vector<2x32xf32>
    %213 = arith.negf %212 : vector<2x32xf32>
    %214 = math.exp %213 : vector<2x32xf32>
    %cst_48 = arith.constant 1.000000e+00 : f32
    %215 = vector.broadcast %cst_48 : f32 to vector<2x32xf32>
    %216 = arith.addf %215, %214 : vector<2x32xf32>
    %217 = arith.divf %215, %216 : vector<2x32xf32>
    %218 = arith.mulf %209, %190 : vector<2x32xf32>
    %219 = arith.mulf %203, %211 : vector<2x32xf32>
    %220 = arith.addf %218, %219 : vector<2x32xf32>
    %221 = math.tanh %220 : vector<2x32xf32>
    %222 = arith.mulf %217, %221 : vector<2x32xf32>
    %c12 = arith.constant 12 : index
    %c0_49 = arith.constant 0 : index
    %223 = vector.load %arg13[%c12, %c0_49] : memref<16x32xf32, #tpu.memory_space<vmem>>, vector<2x32xf32>
    tpu.vector_store %arg13[%c12, %c0_49], %222 {strides = array<i32>} : memref<16x32xf32, #tpu.memory_space<vmem>>, vector<2x32xf32>,
    %224 = vector.extract_strided_slice %8 {offsets = [14, 0], sizes = [2, 128], strides = [1, 1]} : vector<16x128xf32> to vector<2x128xf32>
    %225 = arith.truncf %222 : vector<2x32xf32> to vector<2x32xbf16>
    %cst_50 = arith.constant dense<0.000000e+00> : vector<2x128xf32>
    %226 = tpu.matmul %225, %9, %cst_50 {dimension_numbers = #tpu.dot_dimension_numbers<[1], [0], [0], [1], [0, 0, 1, 1], [], []>} : vector<2x32xbf16>, vector<32x128xbf16>, vector<2x128xf32> -> vector<2x128xf32>
    %227 = arith.addf %224, %226 : vector<2x128xf32>
    %228 = vector.extract_strided_slice %227 {offsets = [0, 0], sizes = [2, 32], strides = [1, 1]} : vector<2x128xf32> to vector<2x32xf32>
    %229 = arith.negf %228 : vector<2x32xf32>
    %230 = math.exp %229 : vector<2x32xf32>
    %cst_51 = arith.constant 1.000000e+00 : f32
    %231 = vector.broadcast %cst_51 : f32 to vector<2x32xf32>
    %232 = arith.addf %231, %230 : vector<2x32xf32>
    %233 = arith.divf %231, %232 : vector<2x32xf32>
    %234 = vector.extract_strided_slice %227 {offsets = [0, 32], sizes = [2, 32], strides = [1, 1]} : vector<2x128xf32> to vector<2x32xf32>
    %235 = arith.negf %234 : vector<2x32xf32>
    %236 = math.exp %235 : vector<2x32xf32>
    %cst_52 = arith.constant 1.000000e+00 : f32
    %237 = vector.broadcast %cst_52 : f32 to vector<2x32xf32>
    %238 = arith.addf %237, %236 : vector<2x32xf32>
    %239 = arith.divf %237, %238 : vector<2x32xf32>
    %240 = vector.extract_strided_slice %227 {offsets = [0, 64], sizes = [2, 32], strides = [1, 1]} : vector<2x128xf32> to vector<2x32xf32>
    %241 = math.tanh %240 : vector<2x32xf32>
    %242 = vector.extract_strided_slice %227 {offsets = [0, 96], sizes = [2, 32], strides = [1, 1]} : vector<2x128xf32> to vector<2x32xf32>
    %243 = arith.negf %242 : vector<2x32xf32>
    %244 = math.exp %243 : vector<2x32xf32>
    %cst_53 = arith.constant 1.000000e+00 : f32
    %245 = vector.broadcast %cst_53 : f32 to vector<2x32xf32>
    %246 = arith.addf %245, %244 : vector<2x32xf32>
    %247 = arith.divf %245, %246 : vector<2x32xf32>
    %248 = arith.mulf %239, %220 : vector<2x32xf32>
    %249 = arith.mulf %233, %241 : vector<2x32xf32>
    %250 = arith.addf %248, %249 : vector<2x32xf32>
    %251 = math.tanh %250 : vector<2x32xf32>
    %252 = arith.mulf %247, %251 : vector<2x32xf32>
    %c14 = arith.constant 14 : index
    %c0_54 = arith.constant 0 : index
    %253 = vector.load %arg13[%c14, %c0_54] : memref<16x32xf32, #tpu.memory_space<vmem>>, vector<2x32xf32>
    tpu.vector_store %arg13[%c14, %c0_54], %252 {strides = array<i32>} : memref<16x32xf32, #tpu.memory_space<vmem>>, vector<2x32xf32>,
    %c0_55 = arith.constant 0 : index
    %c0_56 = arith.constant 0 : index
    %c0_57 = arith.constant 0 : index
    %254 = vector.load %arg11[%c0_55, %c0_56, %c0_57] : memref<2x2x32xf32, #tpu.memory_space<vmem>>, vector<1x2x32xf32>
    %255 = vector.shape_cast %254 : vector<1x2x32xf32> to vector<2x32xf32>
    %256 = vector.shape_cast %252 : vector<2x32xf32> to vector<1x2x32xf32>
    tpu.vector_store %arg11[%c0_55, %c0_56, %c0_57], %256 {strides = array<i32>} : memref<2x2x32xf32, #tpu.memory_space<vmem>>, vector<1x2x32xf32>,
    %c0_58 = arith.constant 0 : index
    %c0_59 = arith.constant 0 : index
    %c0_60 = arith.constant 0 : index
    %257 = vector.load %arg12[%c0_58, %c0_59, %c0_60] : memref<2x2x32xf32, #tpu.memory_space<vmem>>, vector<1x2x32xf32>
    %258 = vector.shape_cast %257 : vector<1x2x32xf32> to vector<2x32xf32>
    %259 = vector.shape_cast %250 : vector<2x32xf32> to vector<1x2x32xf32>
    tpu.vector_store %arg12[%c0_58, %c0_59, %c0_60], %259 {strides = array<i32>} : memref<2x2x32xf32, #tpu.memory_space<vmem>>, vector<1x2x32xf32>,
    %c0_61 = arith.constant 0 : index
    %c0_62 = arith.constant 0 : index
    %260 = vector.load %arg5[%c0_61, %c0_62] : memref<32x128xbf16, #tpu.memory_space<vmem>>, vector<32x128xbf16>
    %c0_63 = arith.constant 0 : index
    %c0_64 = arith.constant 0 : index
    %261 = vector.load %arg6[%c0_63, %c0_64] : memref<32x128xbf16, #tpu.memory_space<vmem>>, vector<32x128xbf16>
    %c0_65 = arith.constant 0 : index
    %c0_66 = arith.constant 0 : index
    %262 = vector.load %arg7[%c0_65, %c0_66] : memref<1x128xf32, #tpu.memory_space<vmem>>, vector<1x128xf32>
    %c0_67 = arith.constant 0 : index
    %c0_68 = arith.constant 0 : index
    %263 = vector.load %arg13[%c0_67, %c0_68] : memref<16x32xf32, #tpu.memory_space<vmem>>, vector<16x32xf32>
    %264 = arith.truncf %263 : vector<16x32xf32> to vector<16x32xbf16>
    %cst_69 = arith.constant dense<0.000000e+00> : vector<16x128xf32>
    %265 = tpu.matmul %264, %260, %cst_69 {dimension_numbers = #tpu.dot_dimension_numbers<[1], [0], [0], [1], [0, 0, 1, 1], [], []>} : vector<16x32xbf16>, vector<32x128xbf16>, vector<16x128xf32> -> vector<16x128xf32>
    %266 = vector.broadcast %262 : vector<1x128xf32> to vector<16x128xf32>
    %267 = arith.addf %265, %266 : vector<16x128xf32>
    %c1 = arith.constant 1 : index
    %c0_70 = arith.constant 0 : index
    %c0_71 = arith.constant 0 : index
    %268 = vector.load %arg11[%c1, %c0_70, %c0_71] : memref<2x2x32xf32, #tpu.memory_space<vmem>>, vector<1x2x32xf32>
    %269 = vector.shape_cast %268 : vector<1x2x32xf32> to vector<2x32xf32>
    %c1_72 = arith.constant 1 : index
    %c0_73 = arith.constant 0 : index
    %c0_74 = arith.constant 0 : index
    %270 = vector.load %arg12[%c1_72, %c0_73, %c0_74] : memref<2x2x32xf32, #tpu.memory_space<vmem>>, vector<1x2x32xf32>
    %271 = vector.shape_cast %270 : vector<1x2x32xf32> to vector<2x32xf32>
    %272 = vector.extract_strided_slice %267 {offsets = [0, 0], sizes = [2, 128], strides = [1, 1]} : vector<16x128xf32> to vector<2x128xf32>
    %273 = arith.truncf %269 : vector<2x32xf32> to vector<2x32xbf16>
    %cst_75 = arith.constant dense<0.000000e+00> : vector<2x128xf32>
    %274 = tpu.matmul %273, %261, %cst_75 {dimension_numbers = #tpu.dot_dimension_numbers<[1], [0], [0], [1], [0, 0, 1, 1], [], []>} : vector<2x32xbf16>, vector<32x128xbf16>, vector<2x128xf32> -> vector<2x128xf32>
    %275 = arith.addf %272, %274 : vector<2x128xf32>
    %276 = vector.extract_strided_slice %275 {offsets = [0, 0], sizes = [2, 32], strides = [1, 1]} : vector<2x128xf32> to vector<2x32xf32>
    %277 = arith.negf %276 : vector<2x32xf32>
    %278 = math.exp %277 : vector<2x32xf32>
    %cst_76 = arith.constant 1.000000e+00 : f32
    %279 = vector.broadcast %cst_76 : f32 to vector<2x32xf32>
    %280 = arith.addf %279, %278 : vector<2x32xf32>
    %281 = arith.divf %279, %280 : vector<2x32xf32>
    %282 = vector.extract_strided_slice %275 {offsets = [0, 32], sizes = [2, 32], strides = [1, 1]} : vector<2x128xf32> to vector<2x32xf32>
    %283 = arith.negf %282 : vector<2x32xf32>
    %284 = math.exp %283 : vector<2x32xf32>
    %cst_77 = arith.constant 1.000000e+00 : f32
    %285 = vector.broadcast %cst_77 : f32 to vector<2x32xf32>
    %286 = arith.addf %285, %284 : vector<2x32xf32>
    %287 = arith.divf %285, %286 : vector<2x32xf32>
    %288 = vector.extract_strided_slice %275 {offsets = [0, 64], sizes = [2, 32], strides = [1, 1]} : vector<2x128xf32> to vector<2x32xf32>
    %289 = math.tanh %288 : vector<2x32xf32>
    %290 = vector.extract_strided_slice %275 {offsets = [0, 96], sizes = [2, 32], strides = [1, 1]} : vector<2x128xf32> to vector<2x32xf32>
    %291 = arith.negf %290 : vector<2x32xf32>
    %292 = math.exp %291 : vector<2x32xf32>
    %cst_78 = arith.constant 1.000000e+00 : f32
    %293 = vector.broadcast %cst_78 : f32 to vector<2x32xf32>
    %294 = arith.addf %293, %292 : vector<2x32xf32>
    %295 = arith.divf %293, %294 : vector<2x32xf32>
    %296 = arith.mulf %287, %271 : vector<2x32xf32>
    %297 = arith.mulf %281, %289 : vector<2x32xf32>
    %298 = arith.addf %296, %297 : vector<2x32xf32>
    %299 = math.tanh %298 : vector<2x32xf32>
    %300 = arith.mulf %295, %299 : vector<2x32xf32>
    %301 = vector.extract_strided_slice %267 {offsets = [2, 0], sizes = [2, 128], strides = [1, 1]} : vector<16x128xf32> to vector<2x128xf32>
    %302 = arith.truncf %300 : vector<2x32xf32> to vector<2x32xbf16>
    %cst_79 = arith.constant dense<0.000000e+00> : vector<2x128xf32>
    %303 = tpu.matmul %302, %261, %cst_79 {dimension_numbers = #tpu.dot_dimension_numbers<[1], [0], [0], [1], [0, 0, 1, 1], [], []>} : vector<2x32xbf16>, vector<32x128xbf16>, vector<2x128xf32> -> vector<2x128xf32>
    %304 = arith.addf %301, %303 : vector<2x128xf32>
    %305 = vector.extract_strided_slice %304 {offsets = [0, 0], sizes = [2, 32], strides = [1, 1]} : vector<2x128xf32> to vector<2x32xf32>
    %306 = arith.negf %305 : vector<2x32xf32>
    %307 = math.exp %306 : vector<2x32xf32>
    %cst_80 = arith.constant 1.000000e+00 : f32
    %308 = vector.broadcast %cst_80 : f32 to vector<2x32xf32>
    %309 = arith.addf %308, %307 : vector<2x32xf32>
    %310 = arith.divf %308, %309 : vector<2x32xf32>
    %311 = vector.extract_strided_slice %304 {offsets = [0, 32], sizes = [2, 32], strides = [1, 1]} : vector<2x128xf32> to vector<2x32xf32>
    %312 = arith.negf %311 : vector<2x32xf32>
    %313 = math.exp %312 : vector<2x32xf32>
    %cst_81 = arith.constant 1.000000e+00 : f32
    %314 = vector.broadcast %cst_81 : f32 to vector<2x32xf32>
    %315 = arith.addf %314, %313 : vector<2x32xf32>
    %316 = arith.divf %314, %315 : vector<2x32xf32>
    %317 = vector.extract_strided_slice %304 {offsets = [0, 64], sizes = [2, 32], strides = [1, 1]} : vector<2x128xf32> to vector<2x32xf32>
    %318 = math.tanh %317 : vector<2x32xf32>
    %319 = vector.extract_strided_slice %304 {offsets = [0, 96], sizes = [2, 32], strides = [1, 1]} : vector<2x128xf32> to vector<2x32xf32>
    %320 = arith.negf %319 : vector<2x32xf32>
    %321 = math.exp %320 : vector<2x32xf32>
    %cst_82 = arith.constant 1.000000e+00 : f32
    %322 = vector.broadcast %cst_82 : f32 to vector<2x32xf32>
    %323 = arith.addf %322, %321 : vector<2x32xf32>
    %324 = arith.divf %322, %323 : vector<2x32xf32>
    %325 = arith.mulf %316, %298 : vector<2x32xf32>
    %326 = arith.mulf %310, %318 : vector<2x32xf32>
    %327 = arith.addf %325, %326 : vector<2x32xf32>
    %328 = math.tanh %327 : vector<2x32xf32>
    %329 = arith.mulf %324, %328 : vector<2x32xf32>
    %330 = vector.extract_strided_slice %267 {offsets = [4, 0], sizes = [2, 128], strides = [1, 1]} : vector<16x128xf32> to vector<2x128xf32>
    %331 = arith.truncf %329 : vector<2x32xf32> to vector<2x32xbf16>
    %cst_83 = arith.constant dense<0.000000e+00> : vector<2x128xf32>
    %332 = tpu.matmul %331, %261, %cst_83 {dimension_numbers = #tpu.dot_dimension_numbers<[1], [0], [0], [1], [0, 0, 1, 1], [], []>} : vector<2x32xbf16>, vector<32x128xbf16>, vector<2x128xf32> -> vector<2x128xf32>
    %333 = arith.addf %330, %332 : vector<2x128xf32>
    %334 = vector.extract_strided_slice %333 {offsets = [0, 0], sizes = [2, 32], strides = [1, 1]} : vector<2x128xf32> to vector<2x32xf32>
    %335 = arith.negf %334 : vector<2x32xf32>
    %336 = math.exp %335 : vector<2x32xf32>
    %cst_84 = arith.constant 1.000000e+00 : f32
    %337 = vector.broadcast %cst_84 : f32 to vector<2x32xf32>
    %338 = arith.addf %337, %336 : vector<2x32xf32>
    %339 = arith.divf %337, %338 : vector<2x32xf32>
    %340 = vector.extract_strided_slice %333 {offsets = [0, 32], sizes = [2, 32], strides = [1, 1]} : vector<2x128xf32> to vector<2x32xf32>
    %341 = arith.negf %340 : vector<2x32xf32>
    %342 = math.exp %341 : vector<2x32xf32>
    %cst_85 = arith.constant 1.000000e+00 : f32
    %343 = vector.broadcast %cst_85 : f32 to vector<2x32xf32>
    %344 = arith.addf %343, %342 : vector<2x32xf32>
    %345 = arith.divf %343, %344 : vector<2x32xf32>
    %346 = vector.extract_strided_slice %333 {offsets = [0, 64], sizes = [2, 32], strides = [1, 1]} : vector<2x128xf32> to vector<2x32xf32>
    %347 = math.tanh %346 : vector<2x32xf32>
    %348 = vector.extract_strided_slice %333 {offsets = [0, 96], sizes = [2, 32], strides = [1, 1]} : vector<2x128xf32> to vector<2x32xf32>
    %349 = arith.negf %348 : vector<2x32xf32>
    %350 = math.exp %349 : vector<2x32xf32>
    %cst_86 = arith.constant 1.000000e+00 : f32
    %351 = vector.broadcast %cst_86 : f32 to vector<2x32xf32>
    %352 = arith.addf %351, %350 : vector<2x32xf32>
    %353 = arith.divf %351, %352 : vector<2x32xf32>
    %354 = arith.mulf %345, %327 : vector<2x32xf32>
    %355 = arith.mulf %339, %347 : vector<2x32xf32>
    %356 = arith.addf %354, %355 : vector<2x32xf32>
    %357 = math.tanh %356 : vector<2x32xf32>
    %358 = arith.mulf %353, %357 : vector<2x32xf32>
    %359 = vector.extract_strided_slice %267 {offsets = [6, 0], sizes = [2, 128], strides = [1, 1]} : vector<16x128xf32> to vector<2x128xf32>
    %360 = arith.truncf %358 : vector<2x32xf32> to vector<2x32xbf16>
    %cst_87 = arith.constant dense<0.000000e+00> : vector<2x128xf32>
    %361 = tpu.matmul %360, %261, %cst_87 {dimension_numbers = #tpu.dot_dimension_numbers<[1], [0], [0], [1], [0, 0, 1, 1], [], []>} : vector<2x32xbf16>, vector<32x128xbf16>, vector<2x128xf32> -> vector<2x128xf32>
    %362 = arith.addf %359, %361 : vector<2x128xf32>
    %363 = vector.extract_strided_slice %362 {offsets = [0, 0], sizes = [2, 32], strides = [1, 1]} : vector<2x128xf32> to vector<2x32xf32>
    %364 = arith.negf %363 : vector<2x32xf32>
    %365 = math.exp %364 : vector<2x32xf32>
    %cst_88 = arith.constant 1.000000e+00 : f32
    %366 = vector.broadcast %cst_88 : f32 to vector<2x32xf32>
    %367 = arith.addf %366, %365 : vector<2x32xf32>
    %368 = arith.divf %366, %367 : vector<2x32xf32>
    %369 = vector.extract_strided_slice %362 {offsets = [0, 32], sizes = [2, 32], strides = [1, 1]} : vector<2x128xf32> to vector<2x32xf32>
    %370 = arith.negf %369 : vector<2x32xf32>
    %371 = math.exp %370 : vector<2x32xf32>
    %cst_89 = arith.constant 1.000000e+00 : f32
    %372 = vector.broadcast %cst_89 : f32 to vector<2x32xf32>
    %373 = arith.addf %372, %371 : vector<2x32xf32>
    %374 = arith.divf %372, %373 : vector<2x32xf32>
    %375 = vector.extract_strided_slice %362 {offsets = [0, 64], sizes = [2, 32], strides = [1, 1]} : vector<2x128xf32> to vector<2x32xf32>
    %376 = math.tanh %375 : vector<2x32xf32>
    %377 = vector.extract_strided_slice %362 {offsets = [0, 96], sizes = [2, 32], strides = [1, 1]} : vector<2x128xf32> to vector<2x32xf32>
    %378 = arith.negf %377 : vector<2x32xf32>
    %379 = math.exp %378 : vector<2x32xf32>
    %cst_90 = arith.constant 1.000000e+00 : f32
    %380 = vector.broadcast %cst_90 : f32 to vector<2x32xf32>
    %381 = arith.addf %380, %379 : vector<2x32xf32>
    %382 = arith.divf %380, %381 : vector<2x32xf32>
    %383 = arith.mulf %374, %356 : vector<2x32xf32>
    %384 = arith.mulf %368, %376 : vector<2x32xf32>
    %385 = arith.addf %383, %384 : vector<2x32xf32>
    %386 = math.tanh %385 : vector<2x32xf32>
    %387 = arith.mulf %382, %386 : vector<2x32xf32>
    %388 = vector.extract_strided_slice %267 {offsets = [8, 0], sizes = [2, 128], strides = [1, 1]} : vector<16x128xf32> to vector<2x128xf32>
    %389 = arith.truncf %387 : vector<2x32xf32> to vector<2x32xbf16>
    %cst_91 = arith.constant dense<0.000000e+00> : vector<2x128xf32>
    %390 = tpu.matmul %389, %261, %cst_91 {dimension_numbers = #tpu.dot_dimension_numbers<[1], [0], [0], [1], [0, 0, 1, 1], [], []>} : vector<2x32xbf16>, vector<32x128xbf16>, vector<2x128xf32> -> vector<2x128xf32>
    %391 = arith.addf %388, %390 : vector<2x128xf32>
    %392 = vector.extract_strided_slice %391 {offsets = [0, 0], sizes = [2, 32], strides = [1, 1]} : vector<2x128xf32> to vector<2x32xf32>
    %393 = arith.negf %392 : vector<2x32xf32>
    %394 = math.exp %393 : vector<2x32xf32>
    %cst_92 = arith.constant 1.000000e+00 : f32
    %395 = vector.broadcast %cst_92 : f32 to vector<2x32xf32>
    %396 = arith.addf %395, %394 : vector<2x32xf32>
    %397 = arith.divf %395, %396 : vector<2x32xf32>
    %398 = vector.extract_strided_slice %391 {offsets = [0, 32], sizes = [2, 32], strides = [1, 1]} : vector<2x128xf32> to vector<2x32xf32>
    %399 = arith.negf %398 : vector<2x32xf32>
    %400 = math.exp %399 : vector<2x32xf32>
    %cst_93 = arith.constant 1.000000e+00 : f32
    %401 = vector.broadcast %cst_93 : f32 to vector<2x32xf32>
    %402 = arith.addf %401, %400 : vector<2x32xf32>
    %403 = arith.divf %401, %402 : vector<2x32xf32>
    %404 = vector.extract_strided_slice %391 {offsets = [0, 64], sizes = [2, 32], strides = [1, 1]} : vector<2x128xf32> to vector<2x32xf32>
    %405 = math.tanh %404 : vector<2x32xf32>
    %406 = vector.extract_strided_slice %391 {offsets = [0, 96], sizes = [2, 32], strides = [1, 1]} : vector<2x128xf32> to vector<2x32xf32>
    %407 = arith.negf %406 : vector<2x32xf32>
    %408 = math.exp %407 : vector<2x32xf32>
    %cst_94 = arith.constant 1.000000e+00 : f32
    %409 = vector.broadcast %cst_94 : f32 to vector<2x32xf32>
    %410 = arith.addf %409, %408 : vector<2x32xf32>
    %411 = arith.divf %409, %410 : vector<2x32xf32>
    %412 = arith.mulf %403, %385 : vector<2x32xf32>
    %413 = arith.mulf %397, %405 : vector<2x32xf32>
    %414 = arith.addf %412, %413 : vector<2x32xf32>
    %415 = math.tanh %414 : vector<2x32xf32>
    %416 = arith.mulf %411, %415 : vector<2x32xf32>
    %417 = vector.extract_strided_slice %267 {offsets = [10, 0], sizes = [2, 128], strides = [1, 1]} : vector<16x128xf32> to vector<2x128xf32>
    %418 = arith.truncf %416 : vector<2x32xf32> to vector<2x32xbf16>
    %cst_95 = arith.constant dense<0.000000e+00> : vector<2x128xf32>
    %419 = tpu.matmul %418, %261, %cst_95 {dimension_numbers = #tpu.dot_dimension_numbers<[1], [0], [0], [1], [0, 0, 1, 1], [], []>} : vector<2x32xbf16>, vector<32x128xbf16>, vector<2x128xf32> -> vector<2x128xf32>
    %420 = arith.addf %417, %419 : vector<2x128xf32>
    %421 = vector.extract_strided_slice %420 {offsets = [0, 0], sizes = [2, 32], strides = [1, 1]} : vector<2x128xf32> to vector<2x32xf32>
    %422 = arith.negf %421 : vector<2x32xf32>
    %423 = math.exp %422 : vector<2x32xf32>
    %cst_96 = arith.constant 1.000000e+00 : f32
    %424 = vector.broadcast %cst_96 : f32 to vector<2x32xf32>
    %425 = arith.addf %424, %423 : vector<2x32xf32>
    %426 = arith.divf %424, %425 : vector<2x32xf32>
    %427 = vector.extract_strided_slice %420 {offsets = [0, 32], sizes = [2, 32], strides = [1, 1]} : vector<2x128xf32> to vector<2x32xf32>
    %428 = arith.negf %427 : vector<2x32xf32>
    %429 = math.exp %428 : vector<2x32xf32>
    %cst_97 = arith.constant 1.000000e+00 : f32
    %430 = vector.broadcast %cst_97 : f32 to vector<2x32xf32>
    %431 = arith.addf %430, %429 : vector<2x32xf32>
    %432 = arith.divf %430, %431 : vector<2x32xf32>
    %433 = vector.extract_strided_slice %420 {offsets = [0, 64], sizes = [2, 32], strides = [1, 1]} : vector<2x128xf32> to vector<2x32xf32>
    %434 = math.tanh %433 : vector<2x32xf32>
    %435 = vector.extract_strided_slice %420 {offsets = [0, 96], sizes = [2, 32], strides = [1, 1]} : vector<2x128xf32> to vector<2x32xf32>
    %436 = arith.negf %435 : vector<2x32xf32>
    %437 = math.exp %436 : vector<2x32xf32>
    %cst_98 = arith.constant 1.000000e+00 : f32
    %438 = vector.broadcast %cst_98 : f32 to vector<2x32xf32>
    %439 = arith.addf %438, %437 : vector<2x32xf32>
    %440 = arith.divf %438, %439 : vector<2x32xf32>
    %441 = arith.mulf %432, %414 : vector<2x32xf32>
    %442 = arith.mulf %426, %434 : vector<2x32xf32>
    %443 = arith.addf %441, %442 : vector<2x32xf32>
    %444 = math.tanh %443 : vector<2x32xf32>
    %445 = arith.mulf %440, %444 : vector<2x32xf32>
    %446 = vector.extract_strided_slice %267 {offsets = [12, 0], sizes = [2, 128], strides = [1, 1]} : vector<16x128xf32> to vector<2x128xf32>
    %447 = arith.truncf %445 : vector<2x32xf32> to vector<2x32xbf16>
    %cst_99 = arith.constant dense<0.000000e+00> : vector<2x128xf32>
    %448 = tpu.matmul %447, %261, %cst_99 {dimension_numbers = #tpu.dot_dimension_numbers<[1], [0], [0], [1], [0, 0, 1, 1], [], []>} : vector<2x32xbf16>, vector<32x128xbf16>, vector<2x128xf32> -> vector<2x128xf32>
    %449 = arith.addf %446, %448 : vector<2x128xf32>
    %450 = vector.extract_strided_slice %449 {offsets = [0, 0], sizes = [2, 32], strides = [1, 1]} : vector<2x128xf32> to vector<2x32xf32>
    %451 = arith.negf %450 : vector<2x32xf32>
    %452 = math.exp %451 : vector<2x32xf32>
    %cst_100 = arith.constant 1.000000e+00 : f32
    %453 = vector.broadcast %cst_100 : f32 to vector<2x32xf32>
    %454 = arith.addf %453, %452 : vector<2x32xf32>
    %455 = arith.divf %453, %454 : vector<2x32xf32>
    %456 = vector.extract_strided_slice %449 {offsets = [0, 32], sizes = [2, 32], strides = [1, 1]} : vector<2x128xf32> to vector<2x32xf32>
    %457 = arith.negf %456 : vector<2x32xf32>
    %458 = math.exp %457 : vector<2x32xf32>
    %cst_101 = arith.constant 1.000000e+00 : f32
    %459 = vector.broadcast %cst_101 : f32 to vector<2x32xf32>
    %460 = arith.addf %459, %458 : vector<2x32xf32>
    %461 = arith.divf %459, %460 : vector<2x32xf32>
    %462 = vector.extract_strided_slice %449 {offsets = [0, 64], sizes = [2, 32], strides = [1, 1]} : vector<2x128xf32> to vector<2x32xf32>
    %463 = math.tanh %462 : vector<2x32xf32>
    %464 = vector.extract_strided_slice %449 {offsets = [0, 96], sizes = [2, 32], strides = [1, 1]} : vector<2x128xf32> to vector<2x32xf32>
    %465 = arith.negf %464 : vector<2x32xf32>
    %466 = math.exp %465 : vector<2x32xf32>
    %cst_102 = arith.constant 1.000000e+00 : f32
    %467 = vector.broadcast %cst_102 : f32 to vector<2x32xf32>
    %468 = arith.addf %467, %466 : vector<2x32xf32>
    %469 = arith.divf %467, %468 : vector<2x32xf32>
    %470 = arith.mulf %461, %443 : vector<2x32xf32>
    %471 = arith.mulf %455, %463 : vector<2x32xf32>
    %472 = arith.addf %470, %471 : vector<2x32xf32>
    %473 = math.tanh %472 : vector<2x32xf32>
    %474 = arith.mulf %469, %473 : vector<2x32xf32>
    %475 = vector.extract_strided_slice %267 {offsets = [14, 0], sizes = [2, 128], strides = [1, 1]} : vector<16x128xf32> to vector<2x128xf32>
    %476 = arith.truncf %474 : vector<2x32xf32> to vector<2x32xbf16>
    %cst_103 = arith.constant dense<0.000000e+00> : vector<2x128xf32>
    %477 = tpu.matmul %476, %261, %cst_103 {dimension_numbers = #tpu.dot_dimension_numbers<[1], [0], [0], [1], [0, 0, 1, 1], [], []>} : vector<2x32xbf16>, vector<32x128xbf16>, vector<2x128xf32> -> vector<2x128xf32>
    %478 = arith.addf %475, %477 : vector<2x128xf32>
    %479 = vector.extract_strided_slice %478 {offsets = [0, 0], sizes = [2, 32], strides = [1, 1]} : vector<2x128xf32> to vector<2x32xf32>
    %480 = arith.negf %479 : vector<2x32xf32>
    %481 = math.exp %480 : vector<2x32xf32>
    %cst_104 = arith.constant 1.000000e+00 : f32
    %482 = vector.broadcast %cst_104 : f32 to vector<2x32xf32>
    %483 = arith.addf %482, %481 : vector<2x32xf32>
    %484 = arith.divf %482, %483 : vector<2x32xf32>
    %485 = vector.extract_strided_slice %478 {offsets = [0, 32], sizes = [2, 32], strides = [1, 1]} : vector<2x128xf32> to vector<2x32xf32>
    %486 = arith.negf %485 : vector<2x32xf32>
    %487 = math.exp %486 : vector<2x32xf32>
    %cst_105 = arith.constant 1.000000e+00 : f32
    %488 = vector.broadcast %cst_105 : f32 to vector<2x32xf32>
    %489 = arith.addf %488, %487 : vector<2x32xf32>
    %490 = arith.divf %488, %489 : vector<2x32xf32>
    %491 = vector.extract_strided_slice %478 {offsets = [0, 64], sizes = [2, 32], strides = [1, 1]} : vector<2x128xf32> to vector<2x32xf32>
    %492 = math.tanh %491 : vector<2x32xf32>
    %493 = vector.extract_strided_slice %478 {offsets = [0, 96], sizes = [2, 32], strides = [1, 1]} : vector<2x128xf32> to vector<2x32xf32>
    %494 = arith.negf %493 : vector<2x32xf32>
    %495 = math.exp %494 : vector<2x32xf32>
    %cst_106 = arith.constant 1.000000e+00 : f32
    %496 = vector.broadcast %cst_106 : f32 to vector<2x32xf32>
    %497 = arith.addf %496, %495 : vector<2x32xf32>
    %498 = arith.divf %496, %497 : vector<2x32xf32>
    %499 = arith.mulf %490, %472 : vector<2x32xf32>
    %500 = arith.mulf %484, %492 : vector<2x32xf32>
    %501 = arith.addf %499, %500 : vector<2x32xf32>
    %502 = math.tanh %501 : vector<2x32xf32>
    %503 = arith.mulf %498, %502 : vector<2x32xf32>
    %c1_107 = arith.constant 1 : index
    %c0_108 = arith.constant 0 : index
    %c0_109 = arith.constant 0 : index
    %504 = vector.load %arg11[%c1_107, %c0_108, %c0_109] : memref<2x2x32xf32, #tpu.memory_space<vmem>>, vector<1x2x32xf32>
    %505 = vector.shape_cast %504 : vector<1x2x32xf32> to vector<2x32xf32>
    %506 = vector.shape_cast %503 : vector<2x32xf32> to vector<1x2x32xf32>
    tpu.vector_store %arg11[%c1_107, %c0_108, %c0_109], %506 {strides = array<i32>} : memref<2x2x32xf32, #tpu.memory_space<vmem>>, vector<1x2x32xf32>,
    %c1_110 = arith.constant 1 : index
    %c0_111 = arith.constant 0 : index
    %c0_112 = arith.constant 0 : index
    %507 = vector.load %arg12[%c1_110, %c0_111, %c0_112] : memref<2x2x32xf32, #tpu.memory_space<vmem>>, vector<1x2x32xf32>
    %508 = vector.shape_cast %507 : vector<1x2x32xf32> to vector<2x32xf32>
    %509 = vector.shape_cast %501 : vector<2x32xf32> to vector<1x2x32xf32>
    tpu.vector_store %arg12[%c1_110, %c0_111, %c0_112], %509 {strides = array<i32>} : memref<2x2x32xf32, #tpu.memory_space<vmem>>, vector<1x2x32xf32>,
    %c1_i32 = arith.constant 1 : i32
    %510 = arith.cmpi eq, %arg0, %c1_i32 : i32
    %511 = arith.extui %510 : i1 to i32
    %c0_i32_113 = arith.constant 0 : i32
    %512 = arith.cmpi ne, %511, %c0_i32_113 : i32
    scf.if %512 {
      %513 = arith.truncf %503 : vector<2x32xf32> to vector<2x32xbf16>
      %c0_114 = arith.constant 0 : index
      %c0_115 = arith.constant 0 : index
      %514 = vector.load %arg8[%c0_114, %c0_115] : memref<32x128xbf16, #tpu.memory_space<vmem>>, vector<32x128xbf16>
      %cst_116 = arith.constant dense<0.000000e+00> : vector<2x128xf32>
      %515 = tpu.matmul %513, %514, %cst_116 {dimension_numbers = #tpu.dot_dimension_numbers<[1], [0], [0], [1], [0, 0, 1, 1], [], []>} : vector<2x32xbf16>, vector<32x128xbf16>, vector<2x128xf32> -> vector<2x128xf32>
      %c0_117 = arith.constant 0 : index
      %c0_118 = arith.constant 0 : index
      %516 = vector.load %arg9[%c0_117, %c0_118] : memref<1x128xf32, #tpu.memory_space<vmem>>, vector<1x128xf32>
      %517 = vector.broadcast %516 : vector<1x128xf32> to vector<2x128xf32>
      %518 = arith.addf %515, %517 : vector<2x128xf32>
      %c0_119 = arith.constant 0 : index
      %c0_120 = arith.constant 0 : index
      %519 = vector.load %arg10[%c0_119, %c0_120] : memref<2x128xf32, #tpu.memory_space<vmem>>, vector<2x128xf32>
      tpu.vector_store %arg10[%c0_119, %c0_120], %518 {strides = array<i32>} : memref<2x128xf32, #tpu.memory_space<vmem>>, vector<2x128xf32>,
    } else {
    }
    return
  }
  func.func @transform_0(%arg0: i32) -> (i32, i32) {
    %c0_i32 = arith.constant 0 : i32
    %c0_i32_0 = arith.constant 0 : i32
    return %arg0, %c0_i32 : i32, i32
  }
  func.func @transform_1(%arg0: i32) -> (i32, i32) {
    %c0_i32 = arith.constant 0 : i32
    %c0_i32_0 = arith.constant 0 : i32
    %c0_i32_1 = arith.constant 0 : i32
    return %c0_i32, %c0_i32_0 : i32, i32
  }
  func.func @transform_2(%arg0: i32) -> (i32, i32) {
    %c0_i32 = arith.constant 0 : i32
    %c0_i32_0 = arith.constant 0 : i32
    %c0_i32_1 = arith.constant 0 : i32
    return %c0_i32, %c0_i32_0 : i32, i32
  }
  func.func @transform_3(%arg0: i32) -> (i32, i32) {
    %c0_i32 = arith.constant 0 : i32
    %c0_i32_0 = arith.constant 0 : i32
    %c0_i32_1 = arith.constant 0 : i32
    return %c0_i32, %c0_i32_0 : i32, i32
  }
  func.func @transform_4(%arg0: i32) -> (i32, i32) {
    %c0_i32 = arith.constant 0 : i32
    %c0_i32_0 = arith.constant 0 : i32
    %c0_i32_1 = arith.constant 0 : i32
    return %c0_i32, %c0_i32_0 : i32, i32
  }
  func.func @transform_5(%arg0: i32) -> (i32, i32) {
    %c0_i32 = arith.constant 0 : i32
    %c0_i32_0 = arith.constant 0 : i32
    %c0_i32_1 = arith.constant 0 : i32
    return %c0_i32, %c0_i32_0 : i32, i32
  }
  func.func @transform_6(%arg0: i32) -> (i32, i32) {
    %c0_i32 = arith.constant 0 : i32
    %c0_i32_0 = arith.constant 0 : i32
    %c0_i32_1 = arith.constant 0 : i32
    return %c0_i32, %c0_i32_0 : i32, i32
  }
  func.func @transform_7(%arg0: i32) -> (i32, i32) {
    %c0_i32 = arith.constant 0 : i32
    %c0_i32_0 = arith.constant 0 : i32
    %c0_i32_1 = arith.constant 0 : i32
    return %c0_i32, %c0_i32_0 : i32, i32
  }
  func.func @transform_8(%arg0: i32) -> (i32, i32) {
    %c0_i32 = arith.constant 0 : i32
    %c0_i32_0 = arith.constant 0 : i32
    %c0_i32_1 = arith.constant 0 : i32
    return %c0_i32, %c0_i32_0 : i32, i32
  }
  func.func @transform_9(%arg0: i32) -> (i32, i32) {
    %c0_i32 = arith.constant 0 : i32
    %c0_i32_0 = arith.constant 0 : i32
    %c0_i32_1 = arith.constant 0 : i32
    return %c0_i32, %c0_i32_0 : i32, i32
  }
}

</mosaic_0001>

<llo_original>
// kernel: tpu_custom_call.1
$region0: #{tpu_custom_call.1}
  #allocation0 [shape = 'u32[]', space=smem, size = 0x4, offset = 0x4, fixed_abs, tag = 'smem constant byte address 0x4 - core index']
  #allocation1 [shape = 'u32[72,128]{1,0:T(1,128)}', space=vmem, size = 0x9000, scoped, tag = 'internal scratch']
  #allocation2 [shape = 'f32[2,2,32]{2,1,0:T(2,128)}', space=vmem, size = 0x800, scoped, tag = 'scratch operand']
  #allocation3 [shape = 'f32[2,2,32]{2,1,0:T(2,128)}', space=vmem, size = 0x800, scoped, tag = 'scratch operand']
  #allocation4 [shape = 'f32[16,32]{1,0:T(8,128)}', space=vmem, size = 0x2000, scoped, tag = 'scratch operand']
  %s0 = inlined_call_operand.vmem [shape: bf16[32,16], index: 0, kind: input, shape index: {}]
  %s1 = inlined_call_operand.vmem [shape: bf16[16,128], index: 1, kind: input, shape index: {}]
  %s2 = inlined_call_operand.vmem [shape: bf16[32,128], index: 2, kind: input, shape index: {}]
  %s3 = inlined_call_operand.vmem [shape: f32[1,128], index: 3, kind: input, shape index: {}]
  %s4 = inlined_call_operand.hbm [shape: bf16[32,128], index: 4, kind: input, shape index: {}]
  %s5 = inlined_call_operand.hbm [shape: bf16[32,128], index: 5, kind: input, shape index: {}]
  %s6 = inlined_call_operand.vmem [shape: f32[1,128], index: 6, kind: input, shape index: {}]
  %s7 = inlined_call_operand.hbm [shape: bf16[32,128], index: 7, kind: input, shape index: {}]
  %s8 = inlined_call_operand.vmem [shape: f32[1,128], index: 8, kind: input, shape index: {}]
  %s9 = inlined_call_operand.hbm [shape: f32[2,128], index: 9, kind: output, shape index: {}]
  %s10 = sld [smem:[#allocation0]]
  $region89: #{tpu_custom_call.1} parent=0
    _
  %s12 = ssub.s32 1, %s10
  %s13 = scalar_select 0, %s12, %s10
  $region1: #{tpu_custom_call.1} parent=0
    #allocation5 [shape = 'u8[8192]{0}', space=vmem, size = 0x2000, scoped, tag = 'input window, operand 4, single buffered']
    #allocation6 [shape = 's32[2]{0}', space=sflag, size = 0x8, scoped, tag = 'scoped memory for tpu_custom_call.1']
    #allocation7 [shape = 's32[2]{0}', space=sflag, size = 0x8, scoped, tag = 'scoped memory for tpu_custom_call.1']
    #allocation8 [shape = 'u8[8192]{0}', space=vmem, size = 0x2000, scoped, tag = 'input window, operand 5, single buffered']
    #allocation9 [shape = 's32[1]{0}', space=sflag, size = 0x4, scoped, tag = 'scoped memory for tpu_custom_call.1']
    #allocation10 [shape = 'u8[8192]{0}', space=vmem, size = 0x2000, scoped, tag = 'input window, operand 7, single buffered']
    #allocation11 [shape = 'u8[1024]{0}', space=vmem, size = 0x400, scoped, tag = 'output window, operand 0, single buffered']
    %14 = vsyncpa [#allocation6], 0
    %15 = vsyncpa [#allocation9], 0
    %16 = vsyncpa [#allocation7], 0
    loop: start=0, step=1, limit=4
    $region2: #{tpu_custom_call.1} parent=1 // loop_pre_header
      _
    $region3: #{tpu_custom_call.1} parent=1 // loop_header
      %s18 = sphi 0, %s22
      %p19 = scmp.ge.s32.totalorder %s18, 4
      %s28 = sphi 0, %s30
      %s31 = sphi 0, %s28
      %s32 = sphi 0, %s31
      %s48 = sphi 0, %s32
      %s52 = sphi 0, %s52
      %s54 = sphi 0, %s52
      %s55 = sphi 0, %s54
      %s69 = sphi 0, %s55
      %s73 = sphi 0, %s73
      %s75 = sphi 0, %s73
      %s76 = sphi 0, %s75
      %s90 = sphi 0, %s76
      %s94 = sphi 0, %s94
      %s96 = sphi 0, %s94
      %s97 = sphi 0, %s96
      %s111 = sphi 0, %s97
      %s115 = sphi 0, %s115
      %s117 = sphi 0, %s115
      %s118 = sphi 0, %s117
      %s132 = sphi 0, %s118
      %s136 = sphi 0, %s136
      %s138 = sphi 0, %s136
      %s139 = sphi 0, %s138
      %s153 = sphi 0, %s139
      %s157 = sphi 0, %s157
      %s159 = sphi 0, %s157
      %s160 = sphi 0, %s159
      %s174 = sphi 0, %s160
      %s178 = sphi 0, %s178
      %s180 = sphi 0, %s178
      %s181 = sphi 0, %s180
      %s195 = sphi 0, %s181
      %s199 = sphi 0, %s199
      %s201 = sphi 0, %s199
      %s202 = sphi 0, %s201
      %s216 = sphi 0, %s202
      %s220 = sphi 0, %s220
      %s222 = sphi 0, %s220
      %s223 = sphi 0, %s222
      %s237 = sphi 0, %s223
    $region4: #{tpu_custom_call.1} parent=1 // loop_header_branch
      %21 = sbr.rel (%p19) target = $region8
    $region5: #{tpu_custom_call.1} parent=1 // loop_body
      %s23 = ssub.s32 %s18, 1
      %s24 = ssub.s32 %s18, 2
      %s25 = sadd.s32 %s18, 1
      %s26 = ssub.s32 %s18, %s25
      %p27 = scmp.eq.s32.totalorder %s26, 0
      %s29 = sadd.s32 %s28, 1
      %s30 = scalar_select %p27, %s28, %s29
      %p33 = pneg %p27
      %p34 = scmp.eq.s32.totalorder %s18, 1
      %p35 = por %p33, %p34
      %p36 = scmp.ne.s32.totalorder %s28, %s31
      %p37 = scmp.eq.s32.totalorder %s18, 0
      %p38 = por %p36, %p37
      %p39 = scmp.ne.s32.totalorder %s28, %s31
      %p40 = scmp.eq.s32.totalorder %s23, 1
      %p41 = por %p39, %p40
      %p42 = scmp.ne.s32.totalorder %s31, %s32
      %p43 = scmp.eq.s32.totalorder %s23, 0
      %p44 = por %p42, %p43
      %p45 = scmp.ne.s32.totalorder %s31, %s32
      %p46 = scmp.eq.s32.totalorder %s24, 1
      %p47 = por %p45, %p46
      %p49 = scmp.ne.s32.totalorder %s32, %s48
      %p50 = scmp.eq.s32.totalorder %s24, 0
      %p51 = por %p49, %p50
      %s53 = sadd.s32 %s52, 1
      %p56 = scmp.eq.s32.totalorder %s18, 1
      %p57 = scmp.ne.s32.totalorder %s52, %s54
      %p58 = scmp.eq.s32.totalorder %s18, 0
      %p59 = por %p57, %p58
      %p60 = scmp.ne.s32.totalorder %s52, %s54
      %p61 = scmp.eq.s32.totalorder %s23, 1
      %p62 = por %p60, %p61
      %p63 = scmp.ne.s32.totalorder %s54, %s55
      %p64 = scmp.eq.s32.totalorder %s23, 0
      %p65 = por %p63, %p64
      %p66 = scmp.ne.s32.totalorder %s54, %s55
      %p67 = scmp.eq.s32.totalorder %s24, 1
      %p68 = por %p66, %p67
      %p70 = scmp.ne.s32.totalorder %s55, %s69
      %p71 = scmp.eq.s32.totalorder %s24, 0
      %p72 = por %p70, %p71
      %s74 = sadd.s32 %s73, 1
      %p77 = scmp.eq.s32.totalorder %s18, 1
      %p78 = scmp.ne.s32.totalorder %s73, %s75
      %p79 = scmp.eq.s32.totalorder %s18, 0
      %p80 = por %p78, %p79
      %p81 = scmp.ne.s32.totalorder %s73, %s75
      %p82 = scmp.eq.s32.totalorder %s23, 1
      %p83 = por %p81, %p82
      %p84 = scmp.ne.s32.totalorder %s75, %s76
      %p85 = scmp.eq.s32.totalorder %s23, 0
      %p86 = por %p84, %p85
      %p87 = scmp.ne.s32.totalorder %s75, %s76
      %p88 = scmp.eq.s32.totalorder %s24, 1
      %p89 = por %p87, %p88
      %p91 = scmp.ne.s32.totalorder %s76, %s90
      %p92 = scmp.eq.s32.totalorder %s24, 0
      %p93 = por %p91, %p92
      %s95 = sadd.s32 %s94, 1
      %p98 = scmp.eq.s32.totalorder %s18, 1
      %p99 = scmp.ne.s32.totalorder %s94, %s96
      %p100 = scmp.eq.s32.totalorder %s18, 0
      %p101 = por %p99, %p100
      %p102 = scmp.ne.s32.totalorder %s94, %s96
      %p103 = scmp.eq.s32.totalorder %s23, 1
      %p104 = por %p102, %p103
      %p105 = scmp.ne.s32.totalorder %s96, %s97
      %p106 = scmp.eq.s32.totalorder %s23, 0
      %p107 = por %p105, %p106
      %p108 = scmp.ne.s32.totalorder %s96, %s97
      %p109 = scmp.eq.s32.totalorder %s24, 1
      %p110 = por %p108, %p109
      %p112 = scmp.ne.s32.totalorder %s97, %s111
      %p113 = scmp.eq.s32.totalorder %s24, 0
      %p114 = por %p112, %p113
      %s116 = sadd.s32 %s115, 1
      %p119 = scmp.eq.s32.totalorder %s18, 1
      %p120 = scmp.ne.s32.totalorder %s115, %s117
      %p121 = scmp.eq.s32.totalorder %s18, 0
      %p122 = por %p120, %p121
      %p123 = scmp.ne.s32.totalorder %s115, %s117
      %p124 = scmp.eq.s32.totalorder %s23, 1
      %p125 = por %p123, %p124
      %p126 = scmp.ne.s32.totalorder %s117, %s118
      %p127 = scmp.eq.s32.totalorder %s23, 0
      %p128 = por %p126, %p127
      %p129 = scmp.ne.s32.totalorder %s117, %s118
      %p130 = scmp.eq.s32.totalorder %s24, 1
      %p131 = por %p129, %p130
      %p133 = scmp.ne.s32.totalorder %s118, %s132
      %p134 = scmp.eq.s32.totalorder %s24, 0
      %p135 = por %p133, %p134
      %s137 = sadd.s32 %s136, 1
      %p140 = scmp.eq.s32.totalorder %s18, 1
      %p141 = scmp.ne.s32.totalorder %s136, %s138
      %p142 = scmp.eq.s32.totalorder %s18, 0
      %p143 = por %p141, %p142
      %p144 = scmp.ne.s32.totalorder %s136, %s138
      %p145 = scmp.eq.s32.totalorder %s23, 1
      %p146 = por %p144, %p145
      %p147 = scmp.ne.s32.totalorder %s138, %s139
      %p148 = scmp.eq.s32.totalorder %s23, 0
      %p149 = por %p147, %p148
      %p150 = scmp.ne.s32.totalorder %s138, %s139
      %p151 = scmp.eq.s32.totalorder %s24, 1
      %p152 = por %p150, %p151
      %p154 = scmp.ne.s32.totalorder %s139, %s153
      %p155 = scmp.eq.s32.totalorder %s24, 0
      %p156 = por %p154, %p155
      %s158 = sadd.s32 %s157, 1
      %p161 = scmp.eq.s32.totalorder %s18, 1
      %p162 = scmp.ne.s32.totalorder %s157, %s159
      %p163 = scmp.eq.s32.totalorder %s18, 0
      %p164 = por %p162, %p163
      %p165 = scmp.ne.s32.totalorder %s157, %s159
      %p166 = scmp.eq.s32.totalorder %s23, 1
      %p167 = por %p165, %p166
      %p168 = scmp.ne.s32.totalorder %s159, %s160
      %p169 = scmp.eq.s32.totalorder %s23, 0
      %p170 = por %p168, %p169
      %p171 = scmp.ne.s32.totalorder %s159, %s160
      %p172 = scmp.eq.s32.totalorder %s24, 1
      %p173 = por %p171, %p172
      %p175 = scmp.ne.s32.totalorder %s160, %s174
      %p176 = scmp.eq.s32.totalorder %s24, 0
      %p177 = por %p175, %p176
      %s179 = sadd.s32 %s178, 1
      %p182 = scmp.eq.s32.totalorder %s18, 1
      %p183 = scmp.ne.s32.totalorder %s178, %s180
      %p184 = scmp.eq.s32.totalorder %s18, 0
      %p185 = por %p183, %p184
      %p186 = scmp.ne.s32.totalorder %s178, %s180
      %p187 = scmp.eq.s32.totalorder %s23, 1
      %p188 = por %p186, %p187
      %p189 = scmp.ne.s32.totalorder %s180, %s181
      %p190 = scmp.eq.s32.totalorder %s23, 0
      %p191 = por %p189, %p190
      %p192 = scmp.ne.s32.totalorder %s180, %s181
      %p193 = scmp.eq.s32.totalorder %s24, 1
      %p194 = por %p192, %p193
      %p196 = scmp.ne.s32.totalorder %s181, %s195
      %p197 = scmp.eq.s32.totalorder %s24, 0
      %p198 = por %p196, %p197
      %s200 = sadd.s32 %s199, 1
      %p203 = scmp.eq.s32.totalorder %s18, 1
      %p204 = scmp.ne.s32.totalorder %s199, %s201
      %p205 = scmp.eq.s32.totalorder %s18, 0
      %p206 = por %p204, %p205
      %p207 = scmp.ne.s32.totalorder %s199, %s201
      %p208 = scmp.eq.s32.totalorder %s23, 1
      %p209 = por %p207, %p208
      %p210 = scmp.ne.s32.totalorder %s201, %s202
      %p211 = scmp.eq.s32.totalorder %s23, 0
      %p212 = por %p210, %p211
      %p213 = scmp.ne.s32.totalorder %s201, %s202
      %p214 = scmp.eq.s32.totalorder %s24, 1
      %p215 = por %p213, %p214
      %p217 = scmp.ne.s32.totalorder %s202, %s216
      %p218 = scmp.eq.s32.totalorder %s24, 0
      %p219 = por %p217, %p218
      %s221 = sadd.s32 %s220, 1
      %p224 = scmp.eq.s32.totalorder %s18, 1
      %p225 = scmp.ne.s32.totalorder %s220, %s222
      %p226 = scmp.eq.s32.totalorder %s18, 0
      %p227 = por %p225, %p226
      %p228 = scmp.ne.s32.totalorder %s220, %s222
      %p229 = scmp.eq.s32.totalorder %s23, 1
      %p230 = por %p228, %p229
      %p231 = scmp.ne.s32.totalorder %s222, %s223
      %p232 = scmp.eq.s32.totalorder %s23, 0
      %p233 = por %p231, %p232
      %p234 = scmp.ne.s32.totalorder %s222, %s223
      %p235 = scmp.eq.s32.totalorder %s24, 1
      %p236 = por %p234, %p235
      %p238 = scmp.ne.s32.totalorder %s223, %s237
      %p239 = scmp.eq.s32.totalorder %s24, 0
      %p240 = por %p238, %p239
      %p241 = scmp.le.s32.totalorder 1, %s18
      %p242 = scmp.lt.s32.totalorder %s18, 3
      %p243 = pnand %p241, %p242
      %p244 = pneg %p243
      // Predicated region
      $region9: #{tpu_custom_call.1} parent=5 // pred_check
        _
      $region10: #{tpu_custom_call.1} parent=5 // pred_check_branch
        %246 = sbr.rel (%p243) target = $region12
      $region11: #{tpu_custom_call.1} parent=5 // pred_region
        %s247 = ssub.s32 %s18, 1
        // Predicated region
        $region13: #{tpu_custom_call.1} parent=11 // pred_check
          %p248 = pneg %p65
        $region14: #{tpu_custom_call.1} parent=11 // pred_check_branch
          %250 = sbr.rel (%p248) target = $region16
        $region15: #{tpu_custom_call.1} parent=11 // pred_region
          _
        $region16: #{tpu_custom_call.1} parent=11 // pred_fallthru
          _
        // Predicated region
        $region17: #{tpu_custom_call.1} parent=11 // pred_check
          %p251 = pneg %p86
        $region18: #{tpu_custom_call.1} parent=11 // pred_check_branch
          %253 = sbr.rel (%p251) target = $region20
        $region19: #{tpu_custom_call.1} parent=11 // pred_region
          _
        $region20: #{tpu_custom_call.1} parent=11 // pred_fallthru
          _
        // Predicated region
        $region21: #{tpu_custom_call.1} parent=11 // pred_check
          %p254 = pneg %p107
        $region22: #{tpu_custom_call.1} parent=11 // pred_check_branch
          %256 = sbr.rel (%p254) target = $region24
        $region23: #{tpu_custom_call.1} parent=11 // pred_region
          _
        $region24: #{tpu_custom_call.1} parent=11 // pred_fallthru
          _
        // Predicated region
        $region25: #{tpu_custom_call.1} parent=11 // pred_check
          %p257 = pneg %p128
        $region26: #{tpu_custom_call.1} parent=11 // pred_check_branch
          %259 = sbr.rel (%p257) target = $region28
        $region27: #{tpu_custom_call.1} parent=11 // pred_region
          %261 = vsyncadd [#allocation6], 0
          %s262 = sshll.u32 %s4, 4
          %s263 = int_to_ptr.hbm [resolvable:$true] %s262
          %s264 = sshll.u32 [#allocation5], 4
          %s265 = int_to_ptr.vmem [resolvable:$true] %s264
          %270 = dma.hbm_to_vmem [thread:$0]  %s263, 256, %s265, [#allocation6], 64, 64, 4
        $region28: #{tpu_custom_call.1} parent=11 // pred_fallthru
          _
        // Predicated region
        $region29: #{tpu_custom_call.1} parent=11 // pred_check
          %p271 = pneg %p149
        $region30: #{tpu_custom_call.1} parent=11 // pred_check_branch
          %273 = sbr.rel (%p271) target = $region32
        $region31: #{tpu_custom_call.1} parent=11 // pred_region
          %275 = vsyncadd [#allocation9], 0
          %s276 = sshll.u32 %s5, 4
          %s277 = int_to_ptr.hbm [resolvable:$true] %s276
          %s278 = sshll.u32 [#allocation8], 4
          %s279 = int_to_ptr.vmem [resolvable:$true] %s278
          %284 = dma.hbm_to_vmem [thread:$0]  %s277, 256, %s279, [#allocation9], 64, 64, 4
        $region32: #{tpu_custom_call.1} parent=11 // pred_fallthru
          _
        // Predicated region
        $region33: #{tpu_custom_call.1} parent=11 // pred_check
          %p285 = pneg %p170
        $region34: #{tpu_custom_call.1} parent=11 // pred_check_branch
          %287 = sbr.rel (%p285) target = $region36
        $region35: #{tpu_custom_call.1} parent=11 // pred_region
          _
        $region36: #{tpu_custom_call.1} parent=11 // pred_fallthru
          _
        // Predicated region
        $region37: #{tpu_custom_call.1} parent=11 // pred_check
          %p288 = pneg %p191
        $region38: #{tpu_custom_call.1} parent=11 // pred_check_branch
          %290 = sbr.rel (%p288) target = $region40
        $region39: #{tpu_custom_call.1} parent=11 // pred_region
          %292 = vsyncadd [#allocation9], 0
          %s293 = sshll.u32 %s7, 4
          %s294 = int_to_ptr.hbm [resolvable:$true] %s293
          %s295 = sshll.u32 [#allocation10], 4
          %s296 = int_to_ptr.vmem [resolvable:$true] %s295
          %301 = dma.hbm_to_vmem [thread:$0]  %s294, 256, %s296, [#allocation9], 64, 64, 4
        $region40: #{tpu_custom_call.1} parent=11 // pred_fallthru
          _
        // Predicated region
        $region41: #{tpu_custom_call.1} parent=11 // pred_check
          %p302 = pneg %p212
        $region42: #{tpu_custom_call.1} parent=11 // pred_check_branch
          %304 = sbr.rel (%p302) target = $region44
        $region43: #{tpu_custom_call.1} parent=11 // pred_region
          _
        $region44: #{tpu_custom_call.1} parent=11 // pred_fallthru
          _
      $region12: #{tpu_custom_call.1} parent=5 // pred_fallthru
        _
      %p305 = scmp.lt.s32.totalorder %s18, 2
      // Predicated region
      $region45: #{tpu_custom_call.1} parent=5 // pred_check
        %p306 = pneg %p305
      $region46: #{tpu_custom_call.1} parent=5 // pred_check_branch
        %308 = sbr.rel (%p306) target = $region48
      $region47: #{tpu_custom_call.1} parent=5 // pred_region
        // Predicated region
        $region49: #{tpu_custom_call.1} parent=47 // pred_check
          %p309 = pneg %p38
        $region50: #{tpu_custom_call.1} parent=47 // pred_check_branch
          %311 = sbr.rel (%p309) target = $region52
        $region51: #{tpu_custom_call.1} parent=47 // pred_region
          %s312 = smul.u32 2, %s18
          %p313 = scmp.lt.s32.totalorder %s312, 3
          %s314 = scalar_select %p313, %s312, 3
          %s315 = smul.addr %s314, 4
          %s316 = scalar_lea.vmem %s0, %s315
          %s317 = smul.u32 2, %s18
        $region52: #{tpu_custom_call.1} parent=47 // pred_fallthru
          _
      $region48: #{tpu_custom_call.1} parent=5 // pred_fallthru
        _
      %p318 = scmp.le.s32.totalorder 1, %s18
      %p319 = scmp.lt.s32.totalorder %s18, 3
      %p320 = pnand %p318, %p319
      %p321 = pneg %p320
      // Predicated region
      $region53: #{tpu_custom_call.1} parent=5 // pred_check
        _
      $region54: #{tpu_custom_call.1} parent=5 // pred_check_branch
        %323 = sbr.rel (%p320) target = $region56
      $region55: #{tpu_custom_call.1} parent=5 // pred_region
        %s324 = ssub.s32 %s18, 1
        // Predicated region
        $region57: #{tpu_custom_call.1} parent=55 // pred_check
          %p325 = pneg %p128
        $region58: #{tpu_custom_call.1} parent=55 // pred_check_branch
          %327 = sbr.rel (%p325) target = $region60
        $region59: #{tpu_custom_call.1} parent=55 // pred_region
          %329 = dma.done [#allocation6], 256
        $region60: #{tpu_custom_call.1} parent=55 // pred_fallthru
          _
        // Predicated region
        $region61: #{tpu_custom_call.1} parent=55 // pred_check
          %p330 = pneg %p149
        $region62: #{tpu_custom_call.1} parent=55 // pred_check_branch
          %332 = sbr.rel (%p330) target = $region64
        $region63: #{tpu_custom_call.1} parent=55 // pred_region
          %334 = dma.done [#allocation9], 256
        $region64: #{tpu_custom_call.1} parent=55 // pred_fallthru
          _
        // Predicated region
        $region65: #{tpu_custom_call.1} parent=55 // pred_check
          %p335 = pneg %p191
        $region66: #{tpu_custom_call.1} parent=55 // pred_check_branch
          %337 = sbr.rel (%p335) target = $region68
        $region67: #{tpu_custom_call.1} parent=55 // pred_region
          %339 = dma.done [#allocation9], 256
        $region68: #{tpu_custom_call.1} parent=55 // pred_fallthru
          _
        %s340 = smul.u32 2, %s23
        %p341 = scmp.lt.s32.totalorder %s340, 3
        %s342 = scalar_select %p341, %s340, 3
        %s343 = smul.addr %s342, 4
        %s344 = scalar_lea.vmem %s0, %s343
        %p345 = pneg %p44
        %p346 = pneg %p41
        %p347 = pneg %p65
        %p348 = pneg %p62
        %p349 = pneg %p86
        %p350 = pneg %p83
        %p351 = pneg %p107
        %p352 = pneg %p104
        %p353 = pneg %p128
        %p354 = pneg %p125
        %p355 = pneg %p149
        %p356 = pneg %p146
        %p357 = pneg %p170
        %p358 = pneg %p167
        %p359 = pneg %p191
        %p360 = pneg %p188
        %p361 = pneg %p212
        %p362 = pneg %p209
        %p363 = pneg %p233
        %p364 = pneg %p230
        %s365 = smul.u32 2, %s23
        %p366 = scmp.lt.s32.totalorder %s365, 3
        %s367 = scalar_select %p366, %s365, 3
        %s368 = smul.addr %s367, 4
        %s369 = scalar_lea.vmem %s0, %s368
        %s370 = smul.u32 2, %s23
        %p372 = scmp.eq.s32.totalorder %s23, 0
        // Predicated region
        $region69: #{tpu_custom_call.1} parent=55 // pred_check
          %p373 = pneg %p372
        $region70: #{tpu_custom_call.1} parent=55 // pred_check_branch
          %375 = sbr.rel (%p373) target = $region72
        $region71: #{tpu_custom_call.1} parent=55 // pred_region
          %vm376 = vcmask 254976
          %377 = vst.msk [vmem:[#allocation2] sm:$0x3] %vm376, 0.0
          %378 = vst.msk [vmem:[#allocation2 + $0x2] sm:$0x3] %vm376, 0.0
          %379 = vst.msk [vmem:[#allocation3] sm:$0x3] %vm376, 0.0
          %380 = vst.msk [vmem:[#allocation3 + $0x2] sm:$0x3] %vm376, 0.0
        $region72: #{tpu_custom_call.1} parent=55 // pred_fallthru
          _
        %v381 = vld [vmem:[%s369] sm:$0xf]
        %v382 = vld [vmem:[%s369 + $0x4] sm:$0xf]
        %v383 = vld [vmem:[%s1] sm:$0xf]
        %v384 = vld [vmem:[%s1 + $0x4] sm:$0xf]
        %v385 = vld [vmem:[%s3] sm:$0x1]
        %v387 = vperm.slane %v385, 0
        %v391 = vunpack.c.l.b16 %v381
        %v392 = vunpack.c.l.b16 %v382
        %v393 = vpack.c.b16 %v392, %v391
        %v396 = vunpack.c.l.b16 %v383
        %v397 = vunpack.c.l.b16 %v384
        %v398 = vpack.c.b16 %v397, %v396
        %vm400 = vcmask 130048
        %v402 = vsel %vm400, %v393, 0
        %404 = vmatpush.bf16.msra.mxu0 0
        %405 = vmatpush.bf16.msra.mxu0 0
        %406 = vmatpush.bf16.msra.mxu0 0
        %407 = vmatpush.bf16.msra.mxu0 0
        %408 = vmatpush.bf16.msra.mxu0 0
        %409 = vmatpush.bf16.msra.mxu0 0
        %410 = vmatpush.bf16.msra.mxu0 0
        %411 = vmatpush.bf16.msra.mxu0 %v398
        %412 = vmatmul.bf16.gmra.mxu0 %v402
        %v413 = vpop.f32.mrf.mxu0
        %v414 = vadd.f32 %v387, %v413
        %v415 = vpop.f32.mrf.mxu0
        %v416 = vadd.f32 %v387, %v415
        %417 = vdwg.mxu0
        %v418 = vld [vmem:[%s2] sm:$0xf]
        %v419 = vld [vmem:[%s2 + $0x4] sm:$0xf]
        %v420 = vld [vmem:[%s2 + $0x8] sm:$0xf]
        %v421 = vld [vmem:[%s2 + $0xc] sm:$0xf]
        %v422 = vld [vmem:[#allocation2] sm:$0x3]
        %v423 = vld [vmem:[#allocation3] sm:$0x3]
        %v424 = vpack.c.bf16 %v422, %v422
        %v429 = vunpack.c.l.b16 %v418
        %v430 = vunpack.c.l.b16 %v419
        %v431 = vunpack.c.l.b16 %v420
        %v432 = vunpack.c.l.b16 %v421
        %v433 = vpack.c.b16 %v430, %v429
        %v434 = vpack.c.b16 %v432, %v431
        %vm437 = vcmask 261120
        %v439 = vsel %vm437, %v424, 0
        %441 = vmatpush.bf16.msra.mxu0 0
        %442 = vmatpush.bf16.msra.mxu0 0
        %443 = vmatpush.bf16.msra.mxu0 0
        %444 = vmatpush.bf16.msra.mxu0 0
        %445 = vmatpush.bf16.msra.mxu0 0
        %446 = vmatpush.bf16.msra.mxu0 0
        %447 = vmatpush.bf16.msra.mxu0 %v434
        %448 = vmatpush.bf16.msra.mxu0 %v433
        %449 = vmatmul.bf16.gmra.mxu0 %v439
        %v450 = vpop.f32.mrf.mxu0
        %v451 = vadd.f32 0.0, %v450
        %v452 = vpop.f32.mrf.mxu0
        %453 = vdwg.mxu0
        %v454 = vadd.f32 %v414, %v451
        %v455 = vxor.u32 %v454, 2147483648
        %v456 = vmul.f32 %v455, 1.442695
        %v457 = vpow.pop %v456
        %v458 = vadd.f32 %v457, 1.0
        %v459 = vrcp.pop %v458
        %v460 = vmul.f32 %v458, %v459
        %v461 = vsub.f32 1.0, %v460
        %v462 = vmul.f32 %v459, %v461
        %v463 = vadd.f32 %v459, %v462
        %vm464 = vweird.f32 %v458
        %vm465 = vweird.f32 %v459
        %vm466 = vmor %vm464, %vm465
        %v467 = vsel %vm466, %v459, %v463
        %v468 = vand.u32 2147483647, %v458
        %vm469 = vcmp.eq.f32.partialorder %v468, 8.507059e+37
        %v470 = vand.u32 %v458, 2147483648
        %v471 = vor.u32 1.1754944e-38, %v470
        %v472 = vsel %vm469, %v471, %v467
        %v473 = vmul.f32 1.0, %v472
        %v474 = vtanh.pop %v454
        %476 = vrot.lane.b32.xlu0 %v423, 32
        %v477 = vpop.permute.xlu0 %476
        %v479 = vmul.f32 %v473, %v477
        %481 = vrot.lane.b32.xlu0 %v474, 64
        %v482 = vpop.permute.xlu0 %481
        %v484 = vmul.f32 %v473, %v482
        %486 = vrot.lane.b32.xlu0 %v484, 32
        %v487 = vpop.permute.xlu0 %486
        %v489 = vadd.f32 %v479, %v487
        %v490 = vtanh.pop %v489
        %492 = vrot.lane.b32.xlu0 %v490, 64
        %v493 = vpop.permute.xlu0 %492
        %v495 = vmul.f32 %v473, %v493
        %497 = vrot.lane.b32.xlu0 %v495, 32
        %v498 = vpop.permute.xlu0 %497
        %vm500 = vcmask 254976
        %501 = vst.msk [vmem:[#allocation4] sm:$0x3] %vm500, %v498
        %v502 = vpack.c.bf16 %v495, %v495
        %504 = vrot.lane.b32.xlu0 %v502, 32
        %v505 = vpop.permute.xlu0 %504
        %v507 = vsel %vm437, %v505, 0
        %509 = vmatpush.bf16.msra.mxu0 0
        %510 = vmatpush.bf16.msra.mxu0 0
        %511 = vmatpush.bf16.msra.mxu0 0
        %512 = vmatpush.bf16.msra.mxu0 0
        %513 = vmatpush.bf16.msra.mxu0 0
        %514 = vmatpush.bf16.msra.mxu0 0
        %515 = vmatpush.bf16.msra.mxu0 %v434
        %516 = vmatpush.bf16.msra.mxu0 %v433
        %517 = vmatmul.bf16.gmra.mxu0 %v507
        %v518 = vpop.f32.mrf.mxu0
        %v519 = vadd.f32 0.0, %v518
        %v520 = vpop.f32.mrf.mxu0
        %521 = vdwg.mxu0
        %v523 = vrot.slane %v519, 6
        %v525 = vadd.f32 %v414, %v523
        %v526 = vxor.u32 %v525, 2147483648
        %v527 = vmul.f32 %v526, 1.442695
        %v528 = vpow.pop %v527
        %v529 = vadd.f32 %v528, 1.0
        %v530 = vrcp.pop %v529
        %v531 = vmul.f32 %v529, %v530
        %v532 = vsub.f32 1.0, %v531
        %v533 = vmul.f32 %v530, %v532
        %v534 = vadd.f32 %v530, %v533
        %vm535 = vweird.f32 %v529
        %vm536 = vweird.f32 %v530
        %vm537 = vmor %vm535, %vm536
        %v538 = vsel %vm537, %v530, %v534
        %v539 = vand.u32 2147483647, %v529
        %vm540 = vcmp.eq.f32.partialorder %v539, 8.507059e+37
        %v541 = vand.u32 %v529, 2147483648
        %v542 = vor.u32 1.1754944e-38, %v541
        %v543 = vsel %vm540, %v542, %v538
        %v544 = vmul.f32 1.0, %v543
        %v545 = vtanh.pop %v525
        %v547 = vrot.slane %v489, 6
        %v549 = vmul.f32 %v544, %v547
        %551 = vrot.lane.b32.xlu0 %v545, 64
        %v552 = vpop.permute.xlu0 %551
        %v554 = vmul.f32 %v544, %v552
        %556 = vrot.lane.b32.xlu0 %v554, 32
        %v557 = vpop.permute.xlu0 %556
        %v559 = vadd.f32 %v549, %v557
        %v560 = vtanh.pop %v559
        %562 = vrot.lane.b32.xlu0 %v560, 64
        %v563 = vpop.permute.xlu0 %562
        %v565 = vmul.f32 %v544, %v563
        %567 = vrot.lane.b32.xlu0 %v565, 32
        %v568 = vpop.permute.xlu0 %567
        %vm570 = vcmask 257026
        %571 = vst.msk [vmem:[#allocation4] sm:$0xc] %vm570, %v568
        %v572 = vpack.c.bf16 %v565, %v565
        %v574 = vrot.slane %v572, 1
        %575 = vrot.lane.b32.xlu0 %v574, 32
        %v576 = vpop.permute.xlu0 %575
        %v578 = vsel %vm437, %v576, 0
        %580 = vmatpush.bf16.msra.mxu0 0
        %581 = vmatpush.bf16.msra.mxu0 0
        %582 = vmatpush.bf16.msra.mxu0 0
        %583 = vmatpush.bf16.msra.mxu0 0
        %584 = vmatpush.bf16.msra.mxu0 0
        %585 = vmatpush.bf16.msra.mxu0 0
        %586 = vmatpush.bf16.msra.mxu0 %v434
        %587 = vmatpush.bf16.msra.mxu0 %v433
        %588 = vmatmul.bf16.gmra.mxu0 %v578
        %v589 = vpop.f32.mrf.mxu0
        %v590 = vadd.f32 0.0, %v589
        %v591 = vpop.f32.mrf.mxu0
        %592 = vdwg.mxu0
        %v594 = vrot.slane %v590, 4
        %v596 = vadd.f32 %v414, %v594
        %v597 = vxor.u32 %v596, 2147483648
        %v598 = vmul.f32 %v597, 1.442695
        %v599 = vpow.pop %v598
        %v600 = vadd.f32 %v599, 1.0
        %v601 = vrcp.pop %v600
        %v602 = vmul.f32 %v600, %v601
        %v603 = vsub.f32 1.0, %v602
        %v604 = vmul.f32 %v601, %v603
        %v605 = vadd.f32 %v601, %v604
        %vm606 = vweird.f32 %v600
        %vm607 = vweird.f32 %v601
        %vm608 = vmor %vm606, %vm607
        %v609 = vsel %vm608, %v601, %v605
        %v610 = vand.u32 2147483647, %v600
        %vm611 = vcmp.eq.f32.partialorder %v610, 8.507059e+37
        %v612 = vand.u32 %v600, 2147483648
        %v613 = vor.u32 1.1754944e-38, %v612
        %v614 = vsel %vm611, %v613, %v609
        %v615 = vmul.f32 1.0, %v614
        %v616 = vtanh.pop %v596
        %v618 = vrot.slane %v559, 6
        %v620 = vmul.f32 %v615, %v618
        %622 = vrot.lane.b32.xlu0 %v616, 64
        %v623 = vpop.permute.xlu0 %622
        %v625 = vmul.f32 %v615, %v623
        %627 = vrot.lane.b32.xlu0 %v625, 32
        %v628 = vpop.permute.xlu0 %627
        %v630 = vadd.f32 %v620, %v628
        %v631 = vtanh.pop %v630
        %633 = vrot.lane.b32.xlu0 %v631, 64
        %v634 = vpop.permute.xlu0 %633
        %v636 = vmul.f32 %v615, %v634
        %638 = vrot.lane.b32.xlu0 %v636, 32
        %v639 = vpop.permute.xlu0 %638
        %vm641 = vcmask 259076
        %642 = vst.msk [vmem:[#allocation4] sm:$0x30] %vm641, %v639
        %v643 = vpack.c.bf16 %v636, %v636
        %v645 = vrot.slane %v643, 2
        %646 = vrot.lane.b32.xlu0 %v645, 32
        %v647 = vpop.permute.xlu0 %646
        %v649 = vsel %vm437, %v647, 0
        %651 = vmatpush.bf16.msra.mxu0 0
        %652 = vmatpush.bf16.msra.mxu0 0
        %653 = vmatpush.bf16.msra.mxu0 0
        %654 = vmatpush.bf16.msra.mxu0 0
        %655 = vmatpush.bf16.msra.mxu0 0
        %656 = vmatpush.bf16.msra.mxu0 0
        %657 = vmatpush.bf16.msra.mxu0 %v434
        %658 = vmatpush.bf16.msra.mxu0 %v433
        %659 = vmatmul.bf16.gmra.mxu0 %v649
        %v660 = vpop.f32.mrf.mxu0
        %v661 = vadd.f32 0.0, %v660
        %v662 = vpop.f32.mrf.mxu0
        %663 = vdwg.mxu0
        %v665 = vrot.slane %v661, 2
        %v667 = vadd.f32 %v414, %v665
        %v668 = vxor.u32 %v667, 2147483648
        %v669 = vmul.f32 %v668, 1.442695
        %v670 = vpow.pop %v669
        %v671 = vadd.f32 %v670, 1.0
        %v672 = vrcp.pop %v671
        %v673 = vmul.f32 %v671, %v672
        %v674 = vsub.f32 1.0, %v673
        %v675 = vmul.f32 %v672, %v674
        %v676 = vadd.f32 %v672, %v675
        %vm677 = vweird.f32 %v671
        %vm678 = vweird.f32 %v672
        %vm679 = vmor %vm677, %vm678
        %v680 = vsel %vm679, %v672, %v676
        %v681 = vand.u32 2147483647, %v671
        %vm682 = vcmp.eq.f32.partialorder %v681, 8.507059e+37
        %v683 = vand.u32 %v671, 2147483648
        %v684 = vor.u32 1.1754944e-38, %v683
        %v685 = vsel %vm682, %v684, %v680
        %v686 = vmul.f32 1.0, %v685
        %v687 = vtanh.pop %v667
        %v689 = vrot.slane %v630, 6
        %v691 = vmul.f32 %v686, %v689
        %693 = vrot.lane.b32.xlu0 %v687, 64
        %v694 = vpop.permute.xlu0 %693
        %v696 = vmul.f32 %v686, %v694
        %698 = vrot.lane.b32.xlu0 %v696, 32
        %v699 = vpop.permute.xlu0 %698
        %v701 = vadd.f32 %v691, %v699
        %v702 = vtanh.pop %v701
        %704 = vrot.lane.b32.xlu0 %v702, 64
        %v705 = vpop.permute.xlu0 %704
        %v707 = vmul.f32 %v686, %v705
        %709 = vrot.lane.b32.xlu0 %v707, 32
        %v710 = vpop.permute.xlu0 %709
        %vm712 = vcmask 261126
        %713 = vst.msk [vmem:[#allocation4] sm:$0xc0] %vm712, %v710
        %v714 = vpack.c.bf16 %v707, %v707
        %v716 = vrot.slane %v714, 3
        %717 = vrot.lane.b32.xlu0 %v716, 32
        %v718 = vpop.permute.xlu0 %717
        %v720 = vsel %vm437, %v718, 0
        %722 = vmatpush.bf16.msra.mxu0 0
        %723 = vmatpush.bf16.msra.mxu0 0
        %724 = vmatpush.bf16.msra.mxu0 0
        %725 = vmatpush.bf16.msra.mxu0 0
        %726 = vmatpush.bf16.msra.mxu0 0
        %727 = vmatpush.bf16.msra.mxu0 0
        %728 = vmatpush.bf16.msra.mxu0 %v434
        %729 = vmatpush.bf16.msra.mxu0 %v433
        %730 = vmatmul.bf16.gmra.mxu0 %v720
        %v731 = vpop.f32.mrf.mxu0
        %v732 = vadd.f32 0.0, %v731
        %v733 = vpop.f32.mrf.mxu0
        %734 = vdwg.mxu0
        %v735 = vadd.f32 %v416, %v732
        %v736 = vxor.u32 %v735, 2147483648
        %v737 = vmul.f32 %v736, 1.442695
        %v738 = vpow.pop %v737
        %v739 = vadd.f32 %v738, 1.0
        %v740 = vrcp.pop %v739
        %v741 = vmul.f32 %v739, %v740
        %v742 = vsub.f32 1.0, %v741
        %v743 = vmul.f32 %v740, %v742
        %v744 = vadd.f32 %v740, %v743
        %vm745 = vweird.f32 %v739
        %vm746 = vweird.f32 %v740
        %vm747 = vmor %vm745, %vm746
        %v748 = vsel %vm747, %v740, %v744
        %v749 = vand.u32 2147483647, %v739
        %vm750 = vcmp.eq.f32.partialorder %v749, 8.507059e+37
        %v751 = vand.u32 %v739, 2147483648
        %v752 = vor.u32 1.1754944e-38, %v751
        %v753 = vsel %vm750, %v752, %v748
        %v754 = vmul.f32 1.0, %v753
        %v755 = vtanh.pop %v735
        %v757 = vrot.slane %v701, 6
        %v759 = vmul.f32 %v754, %v757
        %761 = vrot.lane.b32.xlu0 %v755, 64
        %v762 = vpop.permute.xlu0 %761
        %v764 = vmul.f32 %v754, %v762
        %766 = vrot.lane.b32.xlu0 %v764, 32
        %v767 = vpop.permute.xlu0 %766
        %v769 = vadd.f32 %v759, %v767
        %v770 = vtanh.pop %v769
        %772 = vrot.lane.b32.xlu0 %v770, 64
        %v773 = vpop.permute.xlu0 %772
        %v775 = vmul.f32 %v754, %v773
        %777 = vrot.lane.b32.xlu0 %v775, 32
        %v778 = vpop.permute.xlu0 %777
        %780 = vst.msk [vmem:[#allocation4 + $0x8] sm:$0x3] %vm500, %v778
        %v781 = vpack.c.bf16 %v775, %v775
        %783 = vrot.lane.b32.xlu0 %v781, 32
        %v784 = vpop.permute.xlu0 %783
        %v786 = vsel %vm437, %v784, 0
        %788 = vmatpush.bf16.msra.mxu0 0
        %789 = vmatpush.bf16.msra.mxu0 0
        %790 = vmatpush.bf16.msra.mxu0 0
        %791 = vmatpush.bf16.msra.mxu0 0
        %792 = vmatpush.bf16.msra.mxu0 0
        %793 = vmatpush.bf16.msra.mxu0 0
        %794 = vmatpush.bf16.msra.mxu0 %v434
        %795 = vmatpush.bf16.msra.mxu0 %v433
        %796 = vmatmul.bf16.gmra.mxu0 %v786
        %v797 = vpop.f32.mrf.mxu0
        %v798 = vadd.f32 0.0, %v797
        %v799 = vpop.f32.mrf.mxu0
        %800 = vdwg.mxu0
        %v802 = vrot.slane %v798, 6
        %v804 = vadd.f32 %v416, %v802
        %v805 = vxor.u32 %v804, 2147483648
        %v806 = vmul.f32 %v805, 1.442695
        %v807 = vpow.pop %v806
        %v808 = vadd.f32 %v807, 1.0
        %v809 = vrcp.pop %v808
        %v810 = vmul.f32 %v808, %v809
        %v811 = vsub.f32 1.0, %v810
        %v812 = vmul.f32 %v809, %v811
        %v813 = vadd.f32 %v809, %v812
        %vm814 = vweird.f32 %v808
        %vm815 = vweird.f32 %v809
        %vm816 = vmor %vm814, %vm815
        %v817 = vsel %vm816, %v809, %v813
        %v818 = vand.u32 2147483647, %v808
        %vm819 = vcmp.eq.f32.partialorder %v818, 8.507059e+37
        %v820 = vand.u32 %v808, 2147483648
        %v821 = vor.u32 1.1754944e-38, %v820
        %v822 = vsel %vm819, %v821, %v817
        %v823 = vmul.f32 1.0, %v822
        %v824 = vtanh.pop %v804
        %v826 = vrot.slane %v769, 6
        %v828 = vmul.f32 %v823, %v826
        %830 = vrot.lane.b32.xlu0 %v824, 64
        %v831 = vpop.permute.xlu0 %830
        %v833 = vmul.f32 %v823, %v831
        %835 = vrot.lane.b32.xlu0 %v833, 32
        %v836 = vpop.permute.xlu0 %835
        %v838 = vadd.f32 %v828, %v836
        %v839 = vtanh.pop %v838
        %841 = vrot.lane.b32.xlu0 %v839, 64
        %v842 = vpop.permute.xlu0 %841
        %v844 = vmul.f32 %v823, %v842
        %846 = vrot.lane.b32.xlu0 %v844, 32
        %v847 = vpop.permute.xlu0 %846
        %849 = vst.msk [vmem:[#allocation4 + $0x8] sm:$0xc] %vm570, %v847
        %v850 = vpack.c.bf16 %v844, %v844
        %v852 = vrot.slane %v850, 1
        %853 = vrot.lane.b32.xlu0 %v852, 32
        %v854 = vpop.permute.xlu0 %853
        %v856 = vsel %vm437, %v854, 0
        %858 = vmatpush.bf16.msra.mxu0 0
        %859 = vmatpush.bf16.msra.mxu0 0
        %860 = vmatpush.bf16.msra.mxu0 0
        %861 = vmatpush.bf16.msra.mxu0 0
        %862 = vmatpush.bf16.msra.mxu0 0
        %863 = vmatpush.bf16.msra.mxu0 0
        %864 = vmatpush.bf16.msra.mxu0 %v434
        %865 = vmatpush.bf16.msra.mxu0 %v433
        %866 = vmatmul.bf16.gmra.mxu0 %v856
        %v867 = vpop.f32.mrf.mxu0
        %v868 = vadd.f32 0.0, %v867
        %v869 = vpop.f32.mrf.mxu0
        %870 = vdwg.mxu0
        %v872 = vrot.slane %v868, 4
        %v874 = vadd.f32 %v416, %v872
        %v875 = vxor.u32 %v874, 2147483648
        %v876 = vmul.f32 %v875, 1.442695
        %v877 = vpow.pop %v876
        %v878 = vadd.f32 %v877, 1.0
        %v879 = vrcp.pop %v878
        %v880 = vmul.f32 %v878, %v879
        %v881 = vsub.f32 1.0, %v880
        %v882 = vmul.f32 %v879, %v881
        %v883 = vadd.f32 %v879, %v882
        %vm884 = vweird.f32 %v878
        %vm885 = vweird.f32 %v879
        %vm886 = vmor %vm884, %vm885
        %v887 = vsel %vm886, %v879, %v883
        %v888 = vand.u32 2147483647, %v878
        %vm889 = vcmp.eq.f32.partialorder %v888, 8.507059e+37
        %v890 = vand.u32 %v878, 2147483648
        %v891 = vor.u32 1.1754944e-38, %v890
        %v892 = vsel %vm889, %v891, %v887
        %v893 = vmul.f32 1.0, %v892
        %v894 = vtanh.pop %v874
        %v896 = vrot.slane %v838, 6
        %v898 = vmul.f32 %v893, %v896
        %900 = vrot.lane.b32.xlu0 %v894, 64
        %v901 = vpop.permute.xlu0 %900
        %v903 = vmul.f32 %v893, %v901
        %905 = vrot.lane.b32.xlu0 %v903, 32
        %v906 = vpop.permute.xlu0 %905
        %v908 = vadd.f32 %v898, %v906
        %v909 = vtanh.pop %v908
        %911 = vrot.lane.b32.xlu0 %v909, 64
        %v912 = vpop.permute.xlu0 %911
        %v914 = vmul.f32 %v893, %v912
        %916 = vrot.lane.b32.xlu0 %v914, 32
        %v917 = vpop.permute.xlu0 %916
        %919 = vst.msk [vmem:[#allocation4 + $0x8] sm:$0x30] %vm641, %v917
        %v920 = vpack.c.bf16 %v914, %v914
        %v922 = vrot.slane %v920, 2
        %923 = vrot.lane.b32.xlu0 %v922, 32
        %v924 = vpop.permute.xlu0 %923
        %v926 = vsel %vm437, %v924, 0
        %928 = vmatpush.bf16.msra.mxu0 0
        %929 = vmatpush.bf16.msra.mxu0 0
        %930 = vmatpush.bf16.msra.mxu0 0
        %931 = vmatpush.bf16.msra.mxu0 0
        %932 = vmatpush.bf16.msra.mxu0 0
        %933 = vmatpush.bf16.msra.mxu0 0
        %934 = vmatpush.bf16.msra.mxu0 %v434
        %935 = vmatpush.bf16.msra.mxu0 %v433
        %936 = vmatmul.bf16.gmra.mxu0 %v926
        %v937 = vpop.f32.mrf.mxu0
        %v938 = vadd.f32 0.0, %v937
        %v939 = vpop.f32.mrf.mxu0
        %940 = vdwg.mxu0
        %v942 = vrot.slane %v938, 2
        %v944 = vadd.f32 %v416, %v942
        %v945 = vxor.u32 %v944, 2147483648
        %v946 = vmul.f32 %v945, 1.442695
        %v947 = vpow.pop %v946
        %v948 = vadd.f32 %v947, 1.0
        %v949 = vrcp.pop %v948
        %v950 = vmul.f32 %v948, %v949
        %v951 = vsub.f32 1.0, %v950
        %v952 = vmul.f32 %v949, %v951
        %v953 = vadd.f32 %v949, %v952
        %vm954 = vweird.f32 %v948
        %vm955 = vweird.f32 %v949
        %vm956 = vmor %vm954, %vm955
        %v957 = vsel %vm956, %v949, %v953
        %v958 = vand.u32 2147483647, %v948
        %vm959 = vcmp.eq.f32.partialorder %v958, 8.507059e+37
        %v960 = vand.u32 %v948, 2147483648
        %v961 = vor.u32 1.1754944e-38, %v960
        %v962 = vsel %vm959, %v961, %v957
        %v963 = vmul.f32 1.0, %v962
        %v964 = vtanh.pop %v944
        %v966 = vrot.slane %v908, 6
        %v968 = vmul.f32 %v963, %v966
        %970 = vrot.lane.b32.xlu0 %v964, 64
        %v971 = vpop.permute.xlu0 %970
        %v973 = vmul.f32 %v963, %v971
        %975 = vrot.lane.b32.xlu0 %v973, 32
        %v976 = vpop.permute.xlu0 %975
        %v978 = vadd.f32 %v968, %v976
        %v979 = vtanh.pop %v978
        %981 = vrot.lane.b32.xlu0 %v979, 64
        %v982 = vpop.permute.xlu0 %981
        %v984 = vmul.f32 %v963, %v982
        %986 = vrot.lane.b32.xlu0 %v984, 32
        %v987 = vpop.permute.xlu0 %986
        %989 = vst.msk [vmem:[#allocation4 + $0x8] sm:$0xc0] %vm712, %v987
        %990 = vst.msk [vmem:[#allocation2 - $0x6] sm:$0xc0] %vm712, %v987
        %992 = vrot.lane.b32.xlu0 %v978, 96
        %v993 = vpop.permute.xlu0 %992
        %995 = vst.msk [vmem:[#allocation3 - $0x6] sm:$0xc0] %vm712, %v993
        %v996 = vld [vmem:[#allocation5] sm:$0xf]
        %v997 = vld [vmem:[#allocation5 + $0x4] sm:$0xf]
        %v998 = vld [vmem:[#allocation5 + $0x8] sm:$0xf]
        %v999 = vld [vmem:[#allocation5 + $0xc] sm:$0xf]
        %v1000 = vld [vmem:[#allocation8] sm:$0xf]
        %v1001 = vld [vmem:[#allocation8 + $0x4] sm:$0xf]
        %v1002 = vld [vmem:[#allocation8 + $0x8] sm:$0xf]
        %v1003 = vld [vmem:[#allocation8 + $0xc] sm:$0xf]
        %v1004 = vld [vmem:[%s6] sm:$0x1]
        %v1005 = vld [vmem:[#allocation4] sm:$0xff]
        %v1006 = vld [vmem:[#allocation4 + $0x8] sm:$0xff]
        %v1007 = vpack.c.bf16 %v1006, %v1005
        %v1009 = vperm.slane %v1004, 0
        %v1015 = vunpack.c.l.b16 %v996
        %v1016 = vunpack.c.l.b16 %v997
        %v1017 = vunpack.c.l.b16 %v998
        %v1018 = vunpack.c.l.b16 %v999
        %v1019 = vpack.c.b16 %v1016, %v1015
        %v1020 = vpack.c.b16 %v1018, %v1017
        %v1024 = vsel %vm437, %v1007, 0
        %1026 = vmatpush.bf16.msra.mxu0 0
        %1027 = vmatpush.bf16.msra.mxu0 0
        %1028 = vmatpush.bf16.msra.mxu0 0
        %1029 = vmatpush.bf16.msra.mxu0 0
        %1030 = vmatpush.bf16.msra.mxu0 0
        %1031 = vmatpush.bf16.msra.mxu0 0
        %1032 = vmatpush.bf16.msra.mxu0 %v1020
        %1033 = vmatpush.bf16.msra.mxu0 %v1019
        %1034 = vmatmul.bf16.gmra.mxu0 %v1024
        %v1035 = vpop.f32.mrf.mxu0
        %v1036 = vadd.f32 %v1009, %v1035
        %v1037 = vpop.f32.mrf.mxu0
        %v1038 = vadd.f32 %v1009, %v1037
        %1039 = vdwg.mxu0
        %s1040 = scalar_lea.vmem [#allocation2], 2
        %v1041 = vld [vmem:[%s1040] sm:$0x3]
        %s1042 = scalar_lea.vmem [#allocation3], 2
        %v1043 = vld [vmem:[%s1042] sm:$0x3]
        %v1044 = vpack.c.bf16 %v1041, %v1041
        %v1049 = vunpack.c.l.b16 %v1000
        %v1050 = vunpack.c.l.b16 %v1001
        %v1051 = vunpack.c.l.b16 %v1002
        %v1052 = vunpack.c.l.b16 %v1003
        %v1053 = vpack.c.b16 %v1050, %v1049
        %v1054 = vpack.c.b16 %v1052, %v1051
        %v1058 = vsel %vm437, %v1044, 0
        %1060 = vmatpush.bf16.msra.mxu0 0
        %1061 = vmatpush.bf16.msra.mxu0 0
        %1062 = vmatpush.bf16.msra.mxu0 0
        %1063 = vmatpush.bf16.msra.mxu0 0
        %1064 = vmatpush.bf16.msra.mxu0 0
        %1065 = vmatpush.bf16.msra.mxu0 0
        %1066 = vmatpush.bf16.msra.mxu0 %v1054
        %1067 = vmatpush.bf16.msra.mxu0 %v1053
        %1068 = vmatmul.bf16.gmra.mxu0 %v1058
        %v1069 = vpop.f32.mrf.mxu0
        %v1070 = vadd.f32 0.0, %v1069
        %v1071 = vpop.f32.mrf.mxu0
        %1072 = vdwg.mxu0
        %v1073 = vadd.f32 %v1036, %v1070
        %v1074 = vxor.u32 %v1073, 2147483648
        %v1075 = vmul.f32 %v1074, 1.442695
        %v1076 = vpow.pop %v1075
        %v1077 = vadd.f32 %v1076, 1.0
        %v1078 = vrcp.pop %v1077
        %v1079 = vmul.f32 %v1077, %v1078
        %v1080 = vsub.f32 1.0, %v1079
        %v1081 = vmul.f32 %v1078, %v1080
        %v1082 = vadd.f32 %v1078, %v1081
        %vm1083 = vweird.f32 %v1077
        %vm1084 = vweird.f32 %v1078
        %vm1085 = vmor %vm1083, %vm1084
        %v1086 = vsel %vm1085, %v1078, %v1082
        %v1087 = vand.u32 2147483647, %v1077
        %vm1088 = vcmp.eq.f32.partialorder %v1087, 8.507059e+37
        %v1089 = vand.u32 %v1077, 2147483648
        %v1090 = vor.u32 1.1754944e-38, %v1089
        %v1091 = vsel %vm1088, %v1090, %v1086
        %v1092 = vmul.f32 1.0, %v1091
        %v1093 = vtanh.pop %v1073
        %1095 = vrot.lane.b32.xlu0 %v1043, 32
        %v1096 = vpop.permute.xlu0 %1095
        %v1098 = vmul.f32 %v1092, %v1096
        %1100 = vrot.lane.b32.xlu0 %v1093, 64
        %v1101 = vpop.permute.xlu0 %1100
        %v1103 = vmul.f32 %v1092, %v1101
        %1105 = vrot.lane.b32.xlu0 %v1103, 32
        %v1106 = vpop.permute.xlu0 %1105
        %v1108 = vadd.f32 %v1098, %v1106
        %v1109 = vtanh.pop %v1108
        %1111 = vrot.lane.b32.xlu0 %v1109, 64
        %v1112 = vpop.permute.xlu0 %1111
        %v1114 = vmul.f32 %v1092, %v1112
        %v1115 = vpack.c.bf16 %v1114, %v1114
        %1117 = vrot.lane.b32.xlu0 %v1115, 32
        %v1118 = vpop.permute.xlu0 %1117
        %v1120 = vsel %vm437, %v1118, 0
        %1122 = vmatpush.bf16.msra.mxu0 0
        %1123 = vmatpush.bf16.msra.mxu0 0
        %1124 = vmatpush.bf16.msra.mxu0 0
        %1125 = vmatpush.bf16.msra.mxu0 0
        %1126 = vmatpush.bf16.msra.mxu0 0
        %1127 = vmatpush.bf16.msra.mxu0 0
        %1128 = vmatpush.bf16.msra.mxu0 %v1054
        %1129 = vmatpush.bf16.msra.mxu0 %v1053
        %1130 = vmatmul.bf16.gmra.mxu0 %v1120
        %v1131 = vpop.f32.mrf.mxu0
        %v1132 = vadd.f32 0.0, %v1131
        %v1133 = vpop.f32.mrf.mxu0
        %1134 = vdwg.mxu0
        %v1136 = vrot.slane %v1132, 6
        %v1138 = vadd.f32 %v1036, %v1136
        %v1139 = vxor.u32 %v1138, 2147483648
        %v1140 = vmul.f32 %v1139, 1.442695
        %v1141 = vpow.pop %v1140
        %v1142 = vadd.f32 %v1141, 1.0
        %v1143 = vrcp.pop %v1142
        %v1144 = vmul.f32 %v1142, %v1143
        %v1145 = vsub.f32 1.0, %v1144
        %v1146 = vmul.f32 %v1143, %v1145
        %v1147 = vadd.f32 %v1143, %v1146
        %vm1148 = vweird.f32 %v1142
        %vm1149 = vweird.f32 %v1143
        %vm1150 = vmor %vm1148, %vm1149
        %v1151 = vsel %vm1150, %v1143, %v1147
        %v1152 = vand.u32 2147483647, %v1142
        %vm1153 = vcmp.eq.f32.partialorder %v1152, 8.507059e+37
        %v1154 = vand.u32 %v1142, 2147483648
        %v1155 = vor.u32 1.1754944e-38, %v1154
        %v1156 = vsel %vm1153, %v1155, %v1151
        %v1157 = vmul.f32 1.0, %v1156
        %v1158 = vtanh.pop %v1138
        %v1160 = vrot.slane %v1108, 6
        %v1162 = vmul.f32 %v1157, %v1160
        %1164 = vrot.lane.b32.xlu0 %v1158, 64
        %v1165 = vpop.permute.xlu0 %1164
        %v1167 = vmul.f32 %v1157, %v1165
        %1169 = vrot.lane.b32.xlu0 %v1167, 32
        %v1170 = vpop.permute.xlu0 %1169
        %v1172 = vadd.f32 %v1162, %v1170
        %v1173 = vtanh.pop %v1172
        %1175 = vrot.lane.b32.xlu0 %v1173, 64
        %v1176 = vpop.permute.xlu0 %1175
        %v1178 = vmul.f32 %v1157, %v1176
        %v1179 = vpack.c.bf16 %v1178, %v1178
        %v1181 = vrot.slane %v1179, 1
        %1182 = vrot.lane.b32.xlu0 %v1181, 32
        %v1183 = vpop.permute.xlu0 %1182
        %v1185 = vsel %vm437, %v1183, 0
        %1187 = vmatpush.bf16.msra.mxu0 0
        %1188 = vmatpush.bf16.msra.mxu0 0
        %1189 = vmatpush.bf16.msra.mxu0 0
        %1190 = vmatpush.bf16.msra.mxu0 0
        %1191 = vmatpush.bf16.msra.mxu0 0
        %1192 = vmatpush.bf16.msra.mxu0 0
        %1193 = vmatpush.bf16.msra.mxu0 %v1054
        %1194 = vmatpush.bf16.msra.mxu0 %v1053
        %1195 = vmatmul.bf16.gmra.mxu0 %v1185
        %v1196 = vpop.f32.mrf.mxu0
        %v1197 = vadd.f32 0.0, %v1196
        %v1198 = vpop.f32.mrf.mxu0
        %1199 = vdwg.mxu0
        %v1201 = vrot.slane %v1197, 4
        %v1203 = vadd.f32 %v1036, %v1201
        %v1204 = vxor.u32 %v1203, 2147483648
        %v1205 = vmul.f32 %v1204, 1.442695
        %v1206 = vpow.pop %v1205
        %v1207 = vadd.f32 %v1206, 1.0
        %v1208 = vrcp.pop %v1207
        %v1209 = vmul.f32 %v1207, %v1208
        %v1210 = vsub.f32 1.0, %v1209
        %v1211 = vmul.f32 %v1208, %v1210
        %v1212 = vadd.f32 %v1208, %v1211
        %vm1213 = vweird.f32 %v1207
        %vm1214 = vweird.f32 %v1208
        %vm1215 = vmor %vm1213, %vm1214
        %v1216 = vsel %vm1215, %v1208, %v1212
        %v1217 = vand.u32 2147483647, %v1207
        %vm1218 = vcmp.eq.f32.partialorder %v1217, 8.507059e+37
        %v1219 = vand.u32 %v1207, 2147483648
        %v1220 = vor.u32 1.1754944e-38, %v1219
        %v1221 = vsel %vm1218, %v1220, %v1216
        %v1222 = vmul.f32 1.0, %v1221
        %v1223 = vtanh.pop %v1203
        %v1225 = vrot.slane %v1172, 6
        %v1227 = vmul.f32 %v1222, %v1225
        %1229 = vrot.lane.b32.xlu0 %v1223, 64
        %v1230 = vpop.permute.xlu0 %1229
        %v1232 = vmul.f32 %v1222, %v1230
        %1234 = vrot.lane.b32.xlu0 %v1232, 32
        %v1235 = vpop.permute.xlu0 %1234
        %v1237 = vadd.f32 %v1227, %v1235
        %v1238 = vtanh.pop %v1237
        %1240 = vrot.lane.b32.xlu0 %v1238, 64
        %v1241 = vpop.permute.xlu0 %1240
        %v1243 = vmul.f32 %v1222, %v1241
        %v1244 = vpack.c.bf16 %v1243, %v1243
        %v1246 = vrot.slane %v1244, 2
        %1247 = vrot.lane.b32.xlu0 %v1246, 32
        %v1248 = vpop.permute.xlu0 %1247
        %v1250 = vsel %vm437, %v1248, 0
        %1252 = vmatpush.bf16.msra.mxu0 0
        %1253 = vmatpush.bf16.msra.mxu0 0
        %1254 = vmatpush.bf16.msra.mxu0 0
        %1255 = vmatpush.bf16.msra.mxu0 0
        %1256 = vmatpush.bf16.msra.mxu0 0
        %1257 = vmatpush.bf16.msra.mxu0 0
        %1258 = vmatpush.bf16.msra.mxu0 %v1054
        %1259 = vmatpush.bf16.msra.mxu0 %v1053
        %1260 = vmatmul.bf16.gmra.mxu0 %v1250
        %v1261 = vpop.f32.mrf.mxu0
        %v1262 = vadd.f32 0.0, %v1261
        %v1263 = vpop.f32.mrf.mxu0
        %1264 = vdwg.mxu0
        %v1266 = vrot.slane %v1262, 2
        %v1268 = vadd.f32 %v1036, %v1266
        %v1269 = vxor.u32 %v1268, 2147483648
        %v1270 = vmul.f32 %v1269, 1.442695
        %v1271 = vpow.pop %v1270
        %v1272 = vadd.f32 %v1271, 1.0
        %v1273 = vrcp.pop %v1272
        %v1274 = vmul.f32 %v1272, %v1273
        %v1275 = vsub.f32 1.0, %v1274
        %v1276 = vmul.f32 %v1273, %v1275
        %v1277 = vadd.f32 %v1273, %v1276
        %vm1278 = vweird.f32 %v1272
        %vm1279 = vweird.f32 %v1273
        %vm1280 = vmor %vm1278, %vm1279
        %v1281 = vsel %vm1280, %v1273, %v1277
        %v1282 = vand.u32 2147483647, %v1272
        %vm1283 = vcmp.eq.f32.partialorder %v1282, 8.507059e+37
        %v1284 = vand.u32 %v1272, 2147483648
        %v1285 = vor.u32 1.1754944e-38, %v1284
        %v1286 = vsel %vm1283, %v1285, %v1281
        %v1287 = vmul.f32 1.0, %v1286
        %v1288 = vtanh.pop %v1268
        %v1290 = vrot.slane %v1237, 6
        %v1292 = vmul.f32 %v1287, %v1290
        %1294 = vrot.lane.b32.xlu0 %v1288, 64
        %v1295 = vpop.permute.xlu0 %1294
        %v1297 = vmul.f32 %v1287, %v1295
        %1299 = vrot.lane.b32.xlu0 %v1297, 32
        %v1300 = vpop.permute.xlu0 %1299
        %v1302 = vadd.f32 %v1292, %v1300
        %v1303 = vtanh.pop %v1302
        %1305 = vrot.lane.b32.xlu0 %v1303, 64
        %v1306 = vpop.permute.xlu0 %1305
        %v1308 = vmul.f32 %v1287, %v1306
        %v1309 = vpack.c.bf16 %v1308, %v1308
        %v1311 = vrot.slane %v1309, 3
        %1312 = vrot.lane.b32.xlu0 %v1311, 32
        %v1313 = vpop.permute.xlu0 %1312
        %v1315 = vsel %vm437, %v1313, 0
        %1317 = vmatpush.bf16.msra.mxu0 0
        %1318 = vmatpush.bf16.msra.mxu0 0
        %1319 = vmatpush.bf16.msra.mxu0 0
        %1320 = vmatpush.bf16.msra.mxu0 0
        %1321 = vmatpush.bf16.msra.mxu0 0
        %1322 = vmatpush.bf16.msra.mxu0 0
        %1323 = vmatpush.bf16.msra.mxu0 %v1054
        %1324 = vmatpush.bf16.msra.mxu0 %v1053
        %1325 = vmatmul.bf16.gmra.mxu0 %v1315
        %v1326 = vpop.f32.mrf.mxu0
        %v1327 = vadd.f32 0.0, %v1326
        %v1328 = vpop.f32.mrf.mxu0
        %1329 = vdwg.mxu0
        %v1330 = vadd.f32 %v1038, %v1327
        %v1331 = vxor.u32 %v1330, 2147483648
        %v1332 = vmul.f32 %v1331, 1.442695
        %v1333 = vpow.pop %v1332
        %v1334 = vadd.f32 %v1333, 1.0
        %v1335 = vrcp.pop %v1334
        %v1336 = vmul.f32 %v1334, %v1335
        %v1337 = vsub.f32 1.0, %v1336
        %v1338 = vmul.f32 %v1335, %v1337
        %v1339 = vadd.f32 %v1335, %v1338
        %vm1340 = vweird.f32 %v1334
        %vm1341 = vweird.f32 %v1335
        %vm1342 = vmor %vm1340, %vm1341
        %v1343 = vsel %vm1342, %v1335, %v1339
        %v1344 = vand.u32 2147483647, %v1334
        %vm1345 = vcmp.eq.f32.partialorder %v1344, 8.507059e+37
        %v1346 = vand.u32 %v1334, 2147483648
        %v1347 = vor.u32 1.1754944e-38, %v1346
        %v1348 = vsel %vm1345, %v1347, %v1343
        %v1349 = vmul.f32 1.0, %v1348
        %v1350 = vtanh.pop %v1330
        %v1352 = vrot.slane %v1302, 6
        %v1354 = vmul.f32 %v1349, %v1352
        %1356 = vrot.lane.b32.xlu0 %v1350, 64
        %v1357 = vpop.permute.xlu0 %1356
        %v1359 = vmul.f32 %v1349, %v1357
        %1361 = vrot.lane.b32.xlu0 %v1359, 32
        %v1362 = vpop.permute.xlu0 %1361
        %v1364 = vadd.f32 %v1354, %v1362
        %v1365 = vtanh.pop %v1364
        %1367 = vrot.lane.b32.xlu0 %v1365, 64
        %v1368 = vpop.permute.xlu0 %1367
        %v1370 = vmul.f32 %v1349, %v1368
        %v1371 = vpack.c.bf16 %v1370, %v1370
        %1373 = vrot.lane.b32.xlu0 %v1371, 32
        %v1374 = vpop.permute.xlu0 %1373
        %v1376 = vsel %vm437, %v1374, 0
        %1378 = vmatpush.bf16.msra.mxu0 0
        %1379 = vmatpush.bf16.msra.mxu0 0
        %1380 = vmatpush.bf16.msra.mxu0 0
        %1381 = vmatpush.bf16.msra.mxu0 0
        %1382 = vmatpush.bf16.msra.mxu0 0
        %1383 = vmatpush.bf16.msra.mxu0 0
        %1384 = vmatpush.bf16.msra.mxu0 %v1054
        %1385 = vmatpush.bf16.msra.mxu0 %v1053
        %1386 = vmatmul.bf16.gmra.mxu0 %v1376
        %v1387 = vpop.f32.mrf.mxu0
        %v1388 = vadd.f32 0.0, %v1387
        %v1389 = vpop.f32.mrf.mxu0
        %1390 = vdwg.mxu0
        %v1392 = vrot.slane %v1388, 6
        %v1394 = vadd.f32 %v1038, %v1392
        %v1395 = vxor.u32 %v1394, 2147483648
        %v1396 = vmul.f32 %v1395, 1.442695
        %v1397 = vpow.pop %v1396
        %v1398 = vadd.f32 %v1397, 1.0
        %v1399 = vrcp.pop %v1398
        %v1400 = vmul.f32 %v1398, %v1399
        %v1401 = vsub.f32 1.0, %v1400
        %v1402 = vmul.f32 %v1399, %v1401
        %v1403 = vadd.f32 %v1399, %v1402
        %vm1404 = vweird.f32 %v1398
        %vm1405 = vweird.f32 %v1399
        %vm1406 = vmor %vm1404, %vm1405
        %v1407 = vsel %vm1406, %v1399, %v1403
        %v1408 = vand.u32 2147483647, %v1398
        %vm1409 = vcmp.eq.f32.partialorder %v1408, 8.507059e+37
        %v1410 = vand.u32 %v1398, 2147483648
        %v1411 = vor.u32 1.1754944e-38, %v1410
        %v1412 = vsel %vm1409, %v1411, %v1407
        %v1413 = vmul.f32 1.0, %v1412
        %v1414 = vtanh.pop %v1394
        %v1416 = vrot.slane %v1364, 6
        %v1418 = vmul.f32 %v1413, %v1416
        %1420 = vrot.lane.b32.xlu0 %v1414, 64
        %v1421 = vpop.permute.xlu0 %1420
        %v1423 = vmul.f32 %v1413, %v1421
        %1425 = vrot.lane.b32.xlu0 %v1423, 32
        %v1426 = vpop.permute.xlu0 %1425
        %v1428 = vadd.f32 %v1418, %v1426
        %v1429 = vtanh.pop %v1428
        %1431 = vrot.lane.b32.xlu0 %v1429, 64
        %v1432 = vpop.permute.xlu0 %1431
        %v1434 = vmul.f32 %v1413, %v1432
        %v1435 = vpack.c.bf16 %v1434, %v1434
        %v1437 = vrot.slane %v1435, 1
        %1438 = vrot.lane.b32.xlu0 %v1437, 32
        %v1439 = vpop.permute.xlu0 %1438
        %v1441 = vsel %vm437, %v1439, 0
        %1443 = vmatpush.bf16.msra.mxu0 0
        %1444 = vmatpush.bf16.msra.mxu0 0
        %1445 = vmatpush.bf16.msra.mxu0 0
        %1446 = vmatpush.bf16.msra.mxu0 0
        %1447 = vmatpush.bf16.msra.mxu0 0
        %1448 = vmatpush.bf16.msra.mxu0 0
        %1449 = vmatpush.bf16.msra.mxu0 %v1054
        %1450 = vmatpush.bf16.msra.mxu0 %v1053
        %1451 = vmatmul.bf16.gmra.mxu0 %v1441
        %v1452 = vpop.f32.mrf.mxu0
        %v1453 = vadd.f32 0.0, %v1452
        %v1454 = vpop.f32.mrf.mxu0
        %1455 = vdwg.mxu0
        %v1457 = vrot.slane %v1453, 4
        %v1459 = vadd.f32 %v1038, %v1457
        %v1460 = vxor.u32 %v1459, 2147483648
        %v1461 = vmul.f32 %v1460, 1.442695
        %v1462 = vpow.pop %v1461
        %v1463 = vadd.f32 %v1462, 1.0
        %v1464 = vrcp.pop %v1463
        %v1465 = vmul.f32 %v1463, %v1464
        %v1466 = vsub.f32 1.0, %v1465
        %v1467 = vmul.f32 %v1464, %v1466
        %v1468 = vadd.f32 %v1464, %v1467
        %vm1469 = vweird.f32 %v1463
        %vm1470 = vweird.f32 %v1464
        %vm1471 = vmor %vm1469, %vm1470
        %v1472 = vsel %vm1471, %v1464, %v1468
        %v1473 = vand.u32 2147483647, %v1463
        %vm1474 = vcmp.eq.f32.partialorder %v1473, 8.507059e+37
        %v1475 = vand.u32 %v1463, 2147483648
        %v1476 = vor.u32 1.1754944e-38, %v1475
        %v1477 = vsel %vm1474, %v1476, %v1472
        %v1478 = vmul.f32 1.0, %v1477
        %v1479 = vtanh.pop %v1459
        %v1481 = vrot.slane %v1428, 6
        %v1483 = vmul.f32 %v1478, %v1481
        %1485 = vrot.lane.b32.xlu0 %v1479, 64
        %v1486 = vpop.permute.xlu0 %1485
        %v1488 = vmul.f32 %v1478, %v1486
        %1490 = vrot.lane.b32.xlu0 %v1488, 32
        %v1491 = vpop.permute.xlu0 %1490
        %v1493 = vadd.f32 %v1483, %v1491
        %v1494 = vtanh.pop %v1493
        %1496 = vrot.lane.b32.xlu0 %v1494, 64
        %v1497 = vpop.permute.xlu0 %1496
        %v1499 = vmul.f32 %v1478, %v1497
        %v1500 = vpack.c.bf16 %v1499, %v1499
        %v1502 = vrot.slane %v1500, 2
        %1503 = vrot.lane.b32.xlu0 %v1502, 32
        %v1504 = vpop.permute.xlu0 %1503
        %v1506 = vsel %vm437, %v1504, 0
        %1508 = vmatpush.bf16.msra.mxu0 0
        %1509 = vmatpush.bf16.msra.mxu0 0
        %1510 = vmatpush.bf16.msra.mxu0 0
        %1511 = vmatpush.bf16.msra.mxu0 0
        %1512 = vmatpush.bf16.msra.mxu0 0
        %1513 = vmatpush.bf16.msra.mxu0 0
        %1514 = vmatpush.bf16.msra.mxu0 %v1054
        %1515 = vmatpush.bf16.msra.mxu0 %v1053
        %1516 = vmatmul.bf16.gmra.mxu0 %v1506
        %v1517 = vpop.f32.mrf.mxu0
        %v1518 = vadd.f32 0.0, %v1517
        %v1519 = vpop.f32.mrf.mxu0
        %1520 = vdwg.mxu0
        %v1522 = vrot.slane %v1518, 2
        %v1524 = vadd.f32 %v1038, %v1522
        %v1525 = vxor.u32 %v1524, 2147483648
        %v1526 = vmul.f32 %v1525, 1.442695
        %v1527 = vpow.pop %v1526
        %v1528 = vadd.f32 %v1527, 1.0
        %v1529 = vrcp.pop %v1528
        %v1530 = vmul.f32 %v1528, %v1529
        %v1531 = vsub.f32 1.0, %v1530
        %v1532 = vmul.f32 %v1529, %v1531
        %v1533 = vadd.f32 %v1529, %v1532
        %vm1534 = vweird.f32 %v1528
        %vm1535 = vweird.f32 %v1529
        %vm1536 = vmor %vm1534, %vm1535
        %v1537 = vsel %vm1536, %v1529, %v1533
        %v1538 = vand.u32 2147483647, %v1528
        %vm1539 = vcmp.eq.f32.partialorder %v1538, 8.507059e+37
        %v1540 = vand.u32 %v1528, 2147483648
        %v1541 = vor.u32 1.1754944e-38, %v1540
        %v1542 = vsel %vm1539, %v1541, %v1537
        %v1543 = vmul.f32 1.0, %v1542
        %v1544 = vtanh.pop %v1524
        %v1546 = vrot.slane %v1493, 6
        %v1548 = vmul.f32 %v1543, %v1546
        %1550 = vrot.lane.b32.xlu0 %v1544, 64
        %v1551 = vpop.permute.xlu0 %1550
        %v1553 = vmul.f32 %v1543, %v1551
        %1555 = vrot.lane.b32.xlu0 %v1553, 32
        %v1556 = vpop.permute.xlu0 %1555
        %v1558 = vadd.f32 %v1548, %v1556
        %v1559 = vtanh.pop %v1558
        %1561 = vrot.lane.b32.xlu0 %v1559, 64
        %v1562 = vpop.permute.xlu0 %1561
        %v1564 = vmul.f32 %v1543, %v1562
        %1566 = vrot.lane.b32.xlu0 %v1564, 32
        %v1567 = vpop.permute.xlu0 %1566
        %1569 = vst.msk [vmem:[%s1040 - $0x6] sm:$0xc0] %vm712, %v1567
        %1571 = vrot.lane.b32.xlu0 %v1558, 96
        %v1572 = vpop.permute.xlu0 %1571
        %1574 = vst.msk [vmem:[%s1042 - $0x6] sm:$0xc0] %vm712, %v1572
        %p1575 = scmp.eq.s32.totalorder %s23, 1
        // Predicated region
        $region73: #{tpu_custom_call.1} parent=55 // pred_check
          %p1576 = pneg %p1575
        $region74: #{tpu_custom_call.1} parent=55 // pred_check_branch
          %1578 = sbr.rel (%p1576) target = $region76
        $region75: #{tpu_custom_call.1} parent=55 // pred_region
          %v1579 = vpack.c.bf16 %v1564, %v1564
          %v1580 = vld [vmem:[#allocation10] sm:$0xf]
          %v1581 = vld [vmem:[#allocation10 + $0x4] sm:$0xf]
          %v1582 = vld [vmem:[#allocation10 + $0x8] sm:$0xf]
          %v1583 = vld [vmem:[#allocation10 + $0xc] sm:$0xf]
          %v1584 = vld [vmem:[%s8] sm:$0x1]
          %v1586 = vperm.slane %v1584, 0
          %v1589 = vrot.slane %v1579, 3
          %1590 = vrot.lane.b32.xlu0 %v1589, 32
          %v1591 = vpop.permute.xlu0 %1590
          %v1596 = vunpack.c.l.b16 %v1580
          %v1597 = vunpack.c.l.b16 %v1581
          %v1598 = vunpack.c.l.b16 %v1582
          %v1599 = vunpack.c.l.b16 %v1583
          %v1600 = vpack.c.b16 %v1597, %v1596
          %v1601 = vpack.c.b16 %v1599, %v1598
          %v1605 = vsel %vm437, %v1591, 0
          %1607 = vmatpush.bf16.msra.mxu0 0
          %1608 = vmatpush.bf16.msra.mxu0 0
          %1609 = vmatpush.bf16.msra.mxu0 0
          %1610 = vmatpush.bf16.msra.mxu0 0
          %1611 = vmatpush.bf16.msra.mxu0 0
          %1612 = vmatpush.bf16.msra.mxu0 0
          %1613 = vmatpush.bf16.msra.mxu0 %v1601
          %1614 = vmatpush.bf16.msra.mxu0 %v1600
          %1615 = vmatmul.bf16.gmra.mxu0 %v1605
          %v1616 = vpop.f32.mrf.mxu0
          %v1617 = vadd.f32 %v1586, %v1616
          %v1618 = vpop.f32.mrf.mxu0
          %1619 = vdwg.mxu0
          %1620 = vst [vmem:[#allocation11] sm:$0x3] %v1617
        $region76: #{tpu_custom_call.1} parent=55 // pred_fallthru
          _
        // Predicated region
        $region77: #{tpu_custom_call.1} parent=55 // pred_check
          %p1621 = pneg %p230
        $region78: #{tpu_custom_call.1} parent=55 // pred_check_branch
          %1623 = sbr.rel (%p1621) target = $region80
        $region79: #{tpu_custom_call.1} parent=55 // pred_region
          %1625 = vsyncadd [#allocation7], 0
          %s1627 = sshll.u32 [#allocation11], 4
          %s1628 = int_to_ptr.vmem [resolvable:$true] %s1627
          %s1629 = sshll.u32 %s9, 4
          %s1630 = int_to_ptr.hbm [resolvable:$true] %s1629
          %1632 = dma.vmem_to_hbm [thread:$0]  %s1628, 32, %s1630, [#allocation7]
        $region80: #{tpu_custom_call.1} parent=55 // pred_fallthru
          _
        // Predicated region
        $region81: #{tpu_custom_call.1} parent=55 // pred_check
          %p1633 = pneg %p230
        $region82: #{tpu_custom_call.1} parent=55 // pred_check_branch
          %1635 = sbr.rel (%p1633) target = $region84
        $region83: #{tpu_custom_call.1} parent=55 // pred_region
          %1637 = dma.done [#allocation7], 32
        $region84: #{tpu_custom_call.1} parent=55 // pred_fallthru
          _
      $region56: #{tpu_custom_call.1} parent=5 // pred_fallthru
        _
      %p1638 = scmp.le.s32.totalorder 2, %s18
      // Predicated region
      $region85: #{tpu_custom_call.1} parent=5 // pred_check
        %p1639 = pneg %p1638
      $region86: #{tpu_custom_call.1} parent=5 // pred_check_branch
        %1641 = sbr.rel (%p1639) target = $region88
      $region87: #{tpu_custom_call.1} parent=5 // pred_region
        %s1642 = ssub.s32 %s18, 2
      $region88: #{tpu_custom_call.1} parent=5 // pred_fallthru
        _
    $region6: #{tpu_custom_call.1} parent=1 // loop_footer
      %s22 = sadd.s32 1, %s18
    $region7: #{tpu_custom_call.1} parent=1 // loop_footer_branch
      %17 = sbr.rel target = $region3
    $region8: #{tpu_custom_call.1} parent=1 // loop_exit
      _
    %1643 = vsyncpa [#allocation6], 1
    %s1644 = scalar_lea.sflag [#allocation6], 1
    %1645 = vsyncpa %s1644, 1
    %1646 = vsyncpa [#allocation9], 1
    %1647 = vsyncpa [#allocation7], 1
    %s1648 = scalar_lea.sflag [#allocation7], 1
    %1649 = vsyncpa %s1648, 1

</llo_original>
